<compile_context>
chip_gen: v7x
topology: tpu7x:2x2x1
jax: 0.10.0
libtpu: 0.0.40
codegen_flags: <defaults>
</compile_context>

<pallas_src>
import jax
import jax.numpy as jnp
import numpy as np
from jax.experimental import pallas as pl
from jax.experimental.pallas import tpu as pltpu

C = 120        # logical channel count (fixed by Conv1d(in_channels=120, ...))
CP = 128       # channel count padded to a full lane width
K = 9          # kernel_size
PAD = 4        # padding=4  ("same" conv for odd kernel)
BN_EPS = 1e-5


def _rbert_conv_kernel(x_ref, w1_ref, s1_ref, b1_ref, w2_ref, p2_ref,
                       o_ref, pp_ref):
    """Bb batch elements per grid step.

    x_ref  : (Bb, L+2*PAD, CP) bf16   zero-padded encoder output, channels-last
    w1_ref : (K, CP, CP)       bf16   conv1 weights, tap-major, (C_in, C_out)
    s1_ref : (1, CP)           f32    folded BN1 scale (0 on padded channels)
    b1_ref : (1, CP)           f32    folded BN1 bias  (0 on padded channels)
    w2_ref : (CP, K)           f32    conv2 weights, (C_in, tap)
    p2_ref : (2,)  SMEM        f32    [BN2 scale, BN2 bias]
    o_ref  : (Bb, L)           f32    output block (lane-dense)
    pp_ref : (Bb, L+2*PAD, K)  f32    tiny VMEM staging for conv2 "same" padding
    """
    Bb, Lp, Cp = x_ref.shape
    L = o_ref.shape[1]

    # Zero the conv2 staging scratch once: its PAD edge rows are never written
    # again, and its interior is fully overwritten every step before it is read.
    @pl.when(pl.program_id(0) == 0)
    def _():
        pp_ref[...] = jnp.zeros_like(pp_ref)

    xp = x_ref[...]                                        # (Bb, Lp, Cp) bf16

    # ---- conv1 (120->120, k=9, pad=4): K shifted MXU matmuls, M = Bb*L ----
    acc = jnp.zeros((Bb * L, Cp), jnp.float32)
    for t in range(K):                                     # static unroll
        xs = xp[:, t:t + L, :].reshape(Bb * L, Cp)         # shift stays per-batch
        acc = acc + jnp.dot(xs, w1_ref[t],
                            preferred_element_type=jnp.float32)

    # ---- BatchNorm1d (inference, folded) + Mish, in f32 ----
    h = acc * s1_ref[...] + b1_ref[...]
    h = h * jnp.tanh(jnp.logaddexp(h, 0.0))                # mish = x*tanh(softplus)

    # ---- conv2 (120->1, k=9, pad=4): ONE matmul over all taps ----
    # P[m, t] = sum_c h[m, c] * w2[t, c]
    P = jnp.dot(h, w2_ref[...], preferred_element_type=jnp.float32)   # (Bb*L, K)
    pp_ref[:, PAD:PAD + L, :] = P.reshape(Bb, L, K)

    # banded diagonal sum: y[b, l] = sum_t Ppad[b, l + t, t]
    tap = jax.lax.broadcasted_iota(jnp.int32, (Bb, L, K), 2)
    acc2 = jnp.zeros((Bb, L, K), jnp.float32)
    for t in range(K):
        acc2 = acc2 + jnp.where(tap == t, pp_ref[:, t:t + L, :], 0.0)
    y = jnp.sum(acc2, axis=-1)                             # (Bb, L)

    # ---- BatchNorm1d on the single output channel + ReLU ----
    y = y * p2_ref[0] + p2_ref[1]
    o_ref[...] = jnp.maximum(y, 0.0)


def rbert_conv_head(x_enc, w1, s1, b1, w2, p2, *, block_batch=None):
    """x_enc: (B, L, 120) encoder output.  Returns (B, L) == x.view(B, -1).

    w1: (K, CP, CP) bf16, s1/b1: (1, CP) f32, w2: (CP, K) f32, p2: (2,) f32
    (built by `prepare_params`).  L should be a multiple of 16 (bf16 sublanes).
    """
    B, L, Cin = x_enc.shape
    assert Cin == C
    Lp = L + 2 * PAD

    # Batch elements per grid step: aim for M = Bb*L >= ~256 MXU rows.
    # (At tiny B this may collapse the grid to one step; on v7x that leaves a
    # TensorCore idle, but at such sizes the kernel is trivial anyway.)
    if block_batch is None:
        block_batch = max(1, min(B, max(1, 256 // L)))
    Bb = block_batch
    Bp = pl.cdiv(B, Bb) * Bb

    # Pad batch to a multiple of Bb, pad L for the "same" conv, pad channels to
    # 128, and cast to bf16 for the MXU (padded rows/channels are exact zeros).
    xp = jnp.pad(x_enc, ((0, Bp - B), (PAD, PAD), (0, CP - C))).astype(jnp.bfloat16)

    out = pl.pallas_call(
        _rbert_conv_kernel,
        out_shape=jax.ShapeDtypeStruct((Bp, L), jnp.float32),
        grid=(Bp // Bb,),
        in_specs=[
            pl.BlockSpec((Bb, Lp, CP), lambda g: (g, 0, 0)),     # x (per batch block)
            pl.BlockSpec((K, CP, CP), lambda g: (0, 0, 0)),      # w1 (replicated)
            pl.BlockSpec((1, CP), lambda g: (0, 0)),             # BN1 scale
            pl.BlockSpec((1, CP), lambda g: (0, 0)),             # BN1 bias
            pl.BlockSpec((CP, K), lambda g: (0, 0)),             # w2 (all taps)
            pl.BlockSpec(memory_space=pltpu.MemorySpace.SMEM),   # BN2 scalars
        ],
        out_specs=pl.BlockSpec((Bb, L), lambda g: (g, 0)),       # lane-dense output
        scratch_shapes=[pltpu.VMEM((Bb, Lp, K), jnp.float32)],
        compiler_params=pltpu.CompilerParams(
            dimension_semantics=("parallel",)),
    )(xp, w1, s1, b1, w2, p2)

    return out[:B]                                       # == x.view(x.shape[0], -1)


def prepare_params(w1_t, g1, be1, rm1, rv1, w2_t, g2, be2, rm2, rv2):
    """Fold eval-mode BatchNorm and re-layout PyTorch conv weights for the kernel.

    w1_t: (120, 120, 9) Conv1d weight (C_out, C_in, K);  w2_t: (1, 120, 9).
    """
    s1 = g1 / jnp.sqrt(rv1 + BN_EPS)
    b1 = be1 - rm1 * s1
    s2 = g2 / jnp.sqrt(rv2 + BN_EPS)
    b2 = be2 - rm2 * s2

    # conv1 -> (K, C_in, C_out), channel-pad to 128, bf16 for the MXU.
    w1 = jnp.transpose(w1_t, (2, 1, 0))                                  # (K, C, C)
    w1 = jnp.pad(w1, ((0, 0), (0, CP - C), (0, CP - C))).astype(jnp.bfloat16)

    # conv2 -> (C_in, K), channel-pad to 128; kept in f32 (tiny, one matmul).
    w2 = jnp.pad(w2_t[0], ((0, CP - C), (0, 0))).astype(jnp.float32)     # (CP, K)

    s1p = jnp.pad(s1, (0, CP - C)).reshape(1, CP).astype(jnp.float32)
    b1p = jnp.pad(b1, (0, CP - C)).reshape(1, CP).astype(jnp.float32)
    p2 = jnp.array([s2[0], b2[0]], jnp.float32)
    return w1, s1p, b1p, w2, p2, (s1, b1, s2, b2)


if __name__ == "__main__":
    key = jax.random.PRNGKey(0)
    ks = jax.random.split(key, 12)
    B, L, VOCAB = 2, 16, 100

    # TODO(synk): the external `net_bert` encoder is an injected dependency with
    # unknown architecture; stand it in with a deterministic embedding lookup
    # producing encoded_layers of shape (B, L, 120).
    emb_table = jax.random.normal(ks[0], (VOCAB, C), jnp.float32) * 0.5
    input_ids = jax.random.randint(ks[1], (B, L), 0, VOCAB)
    encoded_layers = emb_table[input_ids]                 # (B, L, C)

    # conv1DBatchNormMish params (PyTorch Conv1d weight shape: (C_out, C_in, K))
    w1_t = jax.random.normal(ks[2], (C, C, K), jnp.float32) * 0.05
    g1 = 1.0 + 0.1 * jax.random.normal(ks[3], (C,), jnp.float32)
    be1 = 0.1 * jax.random.normal(ks[4], (C,), jnp.float32)
    rm1 = 0.1 * jax.random.normal(ks[5], (C,), jnp.float32)
    rv1 = 0.5 + jax.random.uniform(ks[6], (C,), jnp.float32)

    # conv1DBatchNormReLU params
    w2_t = jax.random.normal(ks[7], (1, C, K), jnp.float32) * 0.05
    g2 = 1.0 + 0.1 * jax.random.normal(ks[8], (1,), jnp.float32)
    be2 = 0.1 * jax.random.normal(ks[9], (1,), jnp.float32)
    rm2 = 0.1 * jax.random.normal(ks[10], (1,), jnp.float32)
    rv2 = 0.5 + jax.random.uniform(ks[11], (1,), jnp.float32)

    w1, s1p, b1p, w2, p2, (s1, b1, s2, b2) = prepare_params(
        w1_t, g1, be1, rm1, rv1, w2_t, g2, be2, rm2, rv2)

    out = rbert_conv_head(encoded_layers, w1, s1p, b1p, w2, p2)
    out = jax.block_until_ready(out)

    # ---- pure-JAX reference (mirrors the PyTorch forward, inference BN).
    # The reference uses the same bf16-rounded x / conv1 weights the kernel feeds
    # the MXU (accumulation in f32 in both), so tolerances stay tight.
    def conv1d_same(x, w_kio):
        Lx = x.shape[1]
        xpad = jnp.pad(x, ((0, 0), (PAD, PAD), (0, 0)))
        return sum(jnp.einsum('blc,cd->bld', xpad[:, t:t + Lx, :], w_kio[t],
                              preferred_element_type=jnp.float32)
                   for t in range(K))

    x_bf = encoded_layers.astype(jnp.bfloat16).astype(jnp.float32)
    w1_kio = jnp.transpose(w1_t, (2, 1, 0)).astype(jnp.bfloat16).astype(jnp.float32)
    w2_kio = jnp.transpose(w2_t, (2, 1, 0)).astype(jnp.float32)        # (K, C, 1)

    h_ref = conv1d_same(x_bf, w1_kio) * s1[None, None, :] + b1[None, None, :]
    h_ref = h_ref * jnp.tanh(jnp.logaddexp(h_ref, 0.0))
    y_ref = conv1d_same(h_ref, w2_kio) * s2[0] + b2[0]
    y_ref = jnp.maximum(y_ref, 0.0).reshape(B, -1)

    assert out.shape == (B, L)
    np.testing.assert_allclose(np.asarray(out), np.asarray(y_ref),
                               rtol=2e-3, atol=2e-3)
    print("KERNEL_OK")
</pallas_src>

<mosaic_0001>
module attributes {stable_mosaic.version = 11 : i64} {
  func.func @_rbert_conv_kernel(%arg0: i32, %arg1: memref<2x24x128xbf16, #tpu.memory_space<vmem>>, %arg2: memref<9x128x128xbf16, #tpu.memory_space<vmem>>, %arg3: memref<1x128xf32, #tpu.memory_space<vmem>>, %arg4: memref<1x128xf32, #tpu.memory_space<vmem>>, %arg5: memref<128x9xf32, #tpu.memory_space<vmem>>, %arg6: memref<2xf32, #tpu.memory_space<smem>>, %arg7: memref<2x16xf32, #tpu.memory_space<vmem>>, %arg8: memref<2x24x9xf32, #tpu.memory_space<vmem>>) attributes {dimension_semantics = [#tpu.dimension_semantics<parallel>], iteration_bounds = array<i64: 1>, scalar_prefetch = 0 : i64, scratch_operands = 1 : i64, tpu.core_type = #tpu.core_type<tc>, window_params = [{transform_indices = @transform_0, window_bounds = array<i64: 2, 24, 128>}, {pipeline_mode = #tpu.pipeline_mode<synchronous>, transform_indices = @transform_1, window_bounds = array<i64: 9, 128, 128>}, {pipeline_mode = #tpu.pipeline_mode<synchronous>, transform_indices = @transform_2, window_bounds = array<i64: 1, 128>}, {pipeline_mode = #tpu.pipeline_mode<synchronous>, transform_indices = @transform_3, window_bounds = array<i64: 1, 128>}, {pipeline_mode = #tpu.pipeline_mode<synchronous>, transform_indices = @transform_4, window_bounds = array<i64: 128, 9>}, {transform_indices = @transform_5, window_bounds = array<i64: 2>}, {transform_indices = @transform_6, window_bounds = array<i64: 2, 16>}]} {
    %c0_i32 = arith.constant 0 : i32
    %0 = arith.cmpi eq, %arg0, %c0_i32 : i32
    %1 = arith.extui %0 : i1 to i32
    %c0_i32_0 = arith.constant 0 : i32
    %2 = arith.cmpi ne, %1, %c0_i32_0 : i32
    scf.if %2 {
      %cst_87 = arith.constant 0.000000e+00 : f32
      %151 = vector.broadcast %cst_87 : f32 to vector<2x24x9xf32>
      %c0_88 = arith.constant 0 : index
      %c0_89 = arith.constant 0 : index
      %c0_90 = arith.constant 0 : index
      %152 = vector.load %arg8[%c0_88, %c0_89, %c0_90] : memref<2x24x9xf32, #tpu.memory_space<vmem>>, vector<2x24x9xf32>
      tpu.vector_store %arg8[%c0_88, %c0_89, %c0_90], %151 {strides = array<i32>} : memref<2x24x9xf32, #tpu.memory_space<vmem>>, vector<2x24x9xf32>,
    } else {
    }
    %c0 = arith.constant 0 : index
    %c0_1 = arith.constant 0 : index
    %c0_2 = arith.constant 0 : index
    %3 = vector.load %arg1[%c0, %c0_1, %c0_2] : memref<2x24x128xbf16, #tpu.memory_space<vmem>>, vector<2x24x128xbf16>
    %cst = arith.constant 0.000000e+00 : f32
    %4 = vector.broadcast %cst : f32 to vector<32x128xf32>
    %5 = vector.extract_strided_slice %3 {offsets = [0, 0, 0], sizes = [2, 16, 128], strides = [1, 1, 1]} : vector<2x24x128xbf16> to vector<2x16x128xbf16>
    %6 = vector.shape_cast %5 : vector<2x16x128xbf16> to vector<32x128xbf16>
    %c0_3 = arith.constant 0 : index
    %c0_4 = arith.constant 0 : index
    %c0_5 = arith.constant 0 : index
    %7 = vector.load %arg2[%c0_3, %c0_4, %c0_5] : memref<9x128x128xbf16, #tpu.memory_space<vmem>>, vector<1x128x128xbf16>
    %8 = vector.shape_cast %7 : vector<1x128x128xbf16> to vector<128x128xbf16>
    %cst_6 = arith.constant dense<0.000000e+00> : vector<32x128xf32>
    %9 = tpu.matmul %6, %8, %cst_6 {dimension_numbers = #tpu.dot_dimension_numbers<[1], [0], [0], [1], [0, 0, 1, 1], [], []>} : vector<32x128xbf16>, vector<128x128xbf16>, vector<32x128xf32> -> vector<32x128xf32>
    %10 = arith.addf %4, %9 : vector<32x128xf32>
    %11 = vector.extract_strided_slice %3 {offsets = [0, 1, 0], sizes = [2, 16, 128], strides = [1, 1, 1]} : vector<2x24x128xbf16> to vector<2x16x128xbf16>
    %12 = vector.shape_cast %11 : vector<2x16x128xbf16> to vector<32x128xbf16>
    %c1 = arith.constant 1 : index
    %c0_7 = arith.constant 0 : index
    %c0_8 = arith.constant 0 : index
    %13 = vector.load %arg2[%c1, %c0_7, %c0_8] : memref<9x128x128xbf16, #tpu.memory_space<vmem>>, vector<1x128x128xbf16>
    %14 = vector.shape_cast %13 : vector<1x128x128xbf16> to vector<128x128xbf16>
    %cst_9 = arith.constant dense<0.000000e+00> : vector<32x128xf32>
    %15 = tpu.matmul %12, %14, %cst_9 {dimension_numbers = #tpu.dot_dimension_numbers<[1], [0], [0], [1], [0, 0, 1, 1], [], []>} : vector<32x128xbf16>, vector<128x128xbf16>, vector<32x128xf32> -> vector<32x128xf32>
    %16 = arith.addf %10, %15 : vector<32x128xf32>
    %17 = vector.extract_strided_slice %3 {offsets = [0, 2, 0], sizes = [2, 16, 128], strides = [1, 1, 1]} : vector<2x24x128xbf16> to vector<2x16x128xbf16>
    %18 = vector.shape_cast %17 : vector<2x16x128xbf16> to vector<32x128xbf16>
    %c2 = arith.constant 2 : index
    %c0_10 = arith.constant 0 : index
    %c0_11 = arith.constant 0 : index
    %19 = vector.load %arg2[%c2, %c0_10, %c0_11] : memref<9x128x128xbf16, #tpu.memory_space<vmem>>, vector<1x128x128xbf16>
    %20 = vector.shape_cast %19 : vector<1x128x128xbf16> to vector<128x128xbf16>
    %cst_12 = arith.constant dense<0.000000e+00> : vector<32x128xf32>
    %21 = tpu.matmul %18, %20, %cst_12 {dimension_numbers = #tpu.dot_dimension_numbers<[1], [0], [0], [1], [0, 0, 1, 1], [], []>} : vector<32x128xbf16>, vector<128x128xbf16>, vector<32x128xf32> -> vector<32x128xf32>
    %22 = arith.addf %16, %21 : vector<32x128xf32>
    %23 = vector.extract_strided_slice %3 {offsets = [0, 3, 0], sizes = [2, 16, 128], strides = [1, 1, 1]} : vector<2x24x128xbf16> to vector<2x16x128xbf16>
    %24 = vector.shape_cast %23 : vector<2x16x128xbf16> to vector<32x128xbf16>
    %c3 = arith.constant 3 : index
    %c0_13 = arith.constant 0 : index
    %c0_14 = arith.constant 0 : index
    %25 = vector.load %arg2[%c3, %c0_13, %c0_14] : memref<9x128x128xbf16, #tpu.memory_space<vmem>>, vector<1x128x128xbf16>
    %26 = vector.shape_cast %25 : vector<1x128x128xbf16> to vector<128x128xbf16>
    %cst_15 = arith.constant dense<0.000000e+00> : vector<32x128xf32>
    %27 = tpu.matmul %24, %26, %cst_15 {dimension_numbers = #tpu.dot_dimension_numbers<[1], [0], [0], [1], [0, 0, 1, 1], [], []>} : vector<32x128xbf16>, vector<128x128xbf16>, vector<32x128xf32> -> vector<32x128xf32>
    %28 = arith.addf %22, %27 : vector<32x128xf32>
    %29 = vector.extract_strided_slice %3 {offsets = [0, 4, 0], sizes = [2, 16, 128], strides = [1, 1, 1]} : vector<2x24x128xbf16> to vector<2x16x128xbf16>
    %30 = vector.shape_cast %29 : vector<2x16x128xbf16> to vector<32x128xbf16>
    %c4 = arith.constant 4 : index
    %c0_16 = arith.constant 0 : index
    %c0_17 = arith.constant 0 : index
    %31 = vector.load %arg2[%c4, %c0_16, %c0_17] : memref<9x128x128xbf16, #tpu.memory_space<vmem>>, vector<1x128x128xbf16>
    %32 = vector.shape_cast %31 : vector<1x128x128xbf16> to vector<128x128xbf16>
    %cst_18 = arith.constant dense<0.000000e+00> : vector<32x128xf32>
    %33 = tpu.matmul %30, %32, %cst_18 {dimension_numbers = #tpu.dot_dimension_numbers<[1], [0], [0], [1], [0, 0, 1, 1], [], []>} : vector<32x128xbf16>, vector<128x128xbf16>, vector<32x128xf32> -> vector<32x128xf32>
    %34 = arith.addf %28, %33 : vector<32x128xf32>
    %35 = vector.extract_strided_slice %3 {offsets = [0, 5, 0], sizes = [2, 16, 128], strides = [1, 1, 1]} : vector<2x24x128xbf16> to vector<2x16x128xbf16>
    %36 = vector.shape_cast %35 : vector<2x16x128xbf16> to vector<32x128xbf16>
    %c5 = arith.constant 5 : index
    %c0_19 = arith.constant 0 : index
    %c0_20 = arith.constant 0 : index
    %37 = vector.load %arg2[%c5, %c0_19, %c0_20] : memref<9x128x128xbf16, #tpu.memory_space<vmem>>, vector<1x128x128xbf16>
    %38 = vector.shape_cast %37 : vector<1x128x128xbf16> to vector<128x128xbf16>
    %cst_21 = arith.constant dense<0.000000e+00> : vector<32x128xf32>
    %39 = tpu.matmul %36, %38, %cst_21 {dimension_numbers = #tpu.dot_dimension_numbers<[1], [0], [0], [1], [0, 0, 1, 1], [], []>} : vector<32x128xbf16>, vector<128x128xbf16>, vector<32x128xf32> -> vector<32x128xf32>
    %40 = arith.addf %34, %39 : vector<32x128xf32>
    %41 = vector.extract_strided_slice %3 {offsets = [0, 6, 0], sizes = [2, 16, 128], strides = [1, 1, 1]} : vector<2x24x128xbf16> to vector<2x16x128xbf16>
    %42 = vector.shape_cast %41 : vector<2x16x128xbf16> to vector<32x128xbf16>
    %c6 = arith.constant 6 : index
    %c0_22 = arith.constant 0 : index
    %c0_23 = arith.constant 0 : index
    %43 = vector.load %arg2[%c6, %c0_22, %c0_23] : memref<9x128x128xbf16, #tpu.memory_space<vmem>>, vector<1x128x128xbf16>
    %44 = vector.shape_cast %43 : vector<1x128x128xbf16> to vector<128x128xbf16>
    %cst_24 = arith.constant dense<0.000000e+00> : vector<32x128xf32>
    %45 = tpu.matmul %42, %44, %cst_24 {dimension_numbers = #tpu.dot_dimension_numbers<[1], [0], [0], [1], [0, 0, 1, 1], [], []>} : vector<32x128xbf16>, vector<128x128xbf16>, vector<32x128xf32> -> vector<32x128xf32>
    %46 = arith.addf %40, %45 : vector<32x128xf32>
    %47 = vector.extract_strided_slice %3 {offsets = [0, 7, 0], sizes = [2, 16, 128], strides = [1, 1, 1]} : vector<2x24x128xbf16> to vector<2x16x128xbf16>
    %48 = vector.shape_cast %47 : vector<2x16x128xbf16> to vector<32x128xbf16>
    %c7 = arith.constant 7 : index
    %c0_25 = arith.constant 0 : index
    %c0_26 = arith.constant 0 : index
    %49 = vector.load %arg2[%c7, %c0_25, %c0_26] : memref<9x128x128xbf16, #tpu.memory_space<vmem>>, vector<1x128x128xbf16>
    %50 = vector.shape_cast %49 : vector<1x128x128xbf16> to vector<128x128xbf16>
    %cst_27 = arith.constant dense<0.000000e+00> : vector<32x128xf32>
    %51 = tpu.matmul %48, %50, %cst_27 {dimension_numbers = #tpu.dot_dimension_numbers<[1], [0], [0], [1], [0, 0, 1, 1], [], []>} : vector<32x128xbf16>, vector<128x128xbf16>, vector<32x128xf32> -> vector<32x128xf32>
    %52 = arith.addf %46, %51 : vector<32x128xf32>
    %53 = vector.extract_strided_slice %3 {offsets = [0, 8, 0], sizes = [2, 16, 128], strides = [1, 1, 1]} : vector<2x24x128xbf16> to vector<2x16x128xbf16>
    %54 = vector.shape_cast %53 : vector<2x16x128xbf16> to vector<32x128xbf16>
    %c8 = arith.constant 8 : index
    %c0_28 = arith.constant 0 : index
    %c0_29 = arith.constant 0 : index
    %55 = vector.load %arg2[%c8, %c0_28, %c0_29] : memref<9x128x128xbf16, #tpu.memory_space<vmem>>, vector<1x128x128xbf16>
    %56 = vector.shape_cast %55 : vector<1x128x128xbf16> to vector<128x128xbf16>
    %cst_30 = arith.constant dense<0.000000e+00> : vector<32x128xf32>
    %57 = tpu.matmul %54, %56, %cst_30 {dimension_numbers = #tpu.dot_dimension_numbers<[1], [0], [0], [1], [0, 0, 1, 1], [], []>} : vector<32x128xbf16>, vector<128x128xbf16>, vector<32x128xf32> -> vector<32x128xf32>
    %58 = arith.addf %52, %57 : vector<32x128xf32>
    %c0_31 = arith.constant 0 : index
    %c0_32 = arith.constant 0 : index
    %59 = vector.load %arg3[%c0_31, %c0_32] : memref<1x128xf32, #tpu.memory_space<vmem>>, vector<1x128xf32>
    %60 = vector.broadcast %59 : vector<1x128xf32> to vector<32x128xf32>
    %61 = arith.mulf %58, %60 : vector<32x128xf32>
    %c0_33 = arith.constant 0 : index
    %c0_34 = arith.constant 0 : index
    %62 = vector.load %arg4[%c0_33, %c0_34] : memref<1x128xf32, #tpu.memory_space<vmem>>, vector<1x128xf32>
    %63 = vector.broadcast %62 : vector<1x128xf32> to vector<32x128xf32>
    %64 = arith.addf %61, %63 : vector<32x128xf32>
    %cst_35 = arith.constant 0.000000e+00 : f32
    %65 = vector.broadcast %cst_35 : f32 to vector<32x128xf32>
    %66 = arith.maximumf %64, %65 : vector<32x128xf32>
    %67 = vector.broadcast %cst_35 : f32 to vector<32x128xf32>
    %68 = arith.subf %64, %67 : vector<32x128xf32>
    %69 = arith.cmpf one, %68, %68 : vector<32x128xf32>
    %70 = vector.broadcast %cst_35 : f32 to vector<32x128xf32>
    %71 = arith.addf %64, %70 : vector<32x128xf32>
    %72 = math.absf %68 : vector<32x128xf32>
    %cst_36 = arith.constant 0.000000e+00 : f32
    %73 = vector.broadcast %cst_36 : f32 to vector<32x128xf32>
    %74 = arith.subf %73, %72 : vector<32x128xf32>
    %75 = math.exp %74 : vector<32x128xf32>
    %76 = math.log1p %75 : vector<32x128xf32>
    %77 = arith.addf %66, %76 : vector<32x128xf32>
    %78 = arith.select %69, %71, %77 : vector<32x128xi1>, vector<32x128xf32>
    %79 = math.tanh %78 : vector<32x128xf32>
    %80 = arith.mulf %64, %79 : vector<32x128xf32>
    %c0_37 = arith.constant 0 : index
    %c0_38 = arith.constant 0 : index
    %81 = vector.load %arg5[%c0_37, %c0_38] : memref<128x9xf32, #tpu.memory_space<vmem>>, vector<128x9xf32>
    %cst_39 = arith.constant dense<0.000000e+00> : vector<32x9xf32>
    %82 = tpu.matmul %80, %81, %cst_39 {dimension_numbers = #tpu.dot_dimension_numbers<[1], [0], [0], [1], [0, 0, 1, 1], [], []>} : vector<32x128xf32>, vector<128x9xf32>, vector<32x9xf32> -> vector<32x9xf32>
    %83 = vector.shape_cast %82 : vector<32x9xf32> to vector<2x16x9xf32>
    %c0_40 = arith.constant 0 : index
    %c4_41 = arith.constant 4 : index
    %c0_42 = arith.constant 0 : index
    %84 = vector.load %arg8[%c0_40, %c4_41, %c0_42] : memref<2x24x9xf32, #tpu.memory_space<vmem>>, vector<2x16x9xf32>
    tpu.vector_store %arg8[%c0_40, %c4_41, %c0_42], %83 {strides = array<i32>} : memref<2x24x9xf32, #tpu.memory_space<vmem>>, vector<2x16x9xf32>,
    %85 = tpu.iota {dimensions = array<i32: 2>} : vector<2x16x9xi32>
    %cst_43 = arith.constant 0.000000e+00 : f32
    %86 = vector.broadcast %cst_43 : f32 to vector<2x16x9xf32>
    %c0_i32_44 = arith.constant 0 : i32
    %87 = vector.broadcast %c0_i32_44 : i32 to vector<2x16x9xi32>
    %88 = arith.cmpi eq, %85, %87 : vector<2x16x9xi32>
    %c0_45 = arith.constant 0 : index
    %c0_46 = arith.constant 0 : index
    %c0_47 = arith.constant 0 : index
    %89 = vector.load %arg8[%c0_45, %c0_46, %c0_47] : memref<2x24x9xf32, #tpu.memory_space<vmem>>, vector<2x16x9xf32>
    %cst_48 = arith.constant 0.000000e+00 : f32
    %90 = vector.broadcast %cst_48 : f32 to vector<2x16x9xf32>
    %91 = arith.select %88, %89, %90 : vector<2x16x9xi1>, vector<2x16x9xf32>
    %92 = arith.addf %86, %91 : vector<2x16x9xf32>
    %c1_i32 = arith.constant 1 : i32
    %93 = vector.broadcast %c1_i32 : i32 to vector<2x16x9xi32>
    %94 = arith.cmpi eq, %85, %93 : vector<2x16x9xi32>
    %c0_49 = arith.constant 0 : index
    %c1_50 = arith.constant 1 : index
    %c0_51 = arith.constant 0 : index
    %95 = vector.load %arg8[%c0_49, %c1_50, %c0_51] : memref<2x24x9xf32, #tpu.memory_space<vmem>>, vector<2x16x9xf32>
    %cst_52 = arith.constant 0.000000e+00 : f32
    %96 = vector.broadcast %cst_52 : f32 to vector<2x16x9xf32>
    %97 = arith.select %94, %95, %96 : vector<2x16x9xi1>, vector<2x16x9xf32>
    %98 = arith.addf %92, %97 : vector<2x16x9xf32>
    %c2_i32 = arith.constant 2 : i32
    %99 = vector.broadcast %c2_i32 : i32 to vector<2x16x9xi32>
    %100 = arith.cmpi eq, %85, %99 : vector<2x16x9xi32>
    %c0_53 = arith.constant 0 : index
    %c2_54 = arith.constant 2 : index
    %c0_55 = arith.constant 0 : index
    %101 = vector.load %arg8[%c0_53, %c2_54, %c0_55] : memref<2x24x9xf32, #tpu.memory_space<vmem>>, vector<2x16x9xf32>
    %cst_56 = arith.constant 0.000000e+00 : f32
    %102 = vector.broadcast %cst_56 : f32 to vector<2x16x9xf32>
    %103 = arith.select %100, %101, %102 : vector<2x16x9xi1>, vector<2x16x9xf32>
    %104 = arith.addf %98, %103 : vector<2x16x9xf32>
    %c3_i32 = arith.constant 3 : i32
    %105 = vector.broadcast %c3_i32 : i32 to vector<2x16x9xi32>
    %106 = arith.cmpi eq, %85, %105 : vector<2x16x9xi32>
    %c0_57 = arith.constant 0 : index
    %c3_58 = arith.constant 3 : index
    %c0_59 = arith.constant 0 : index
    %107 = vector.load %arg8[%c0_57, %c3_58, %c0_59] : memref<2x24x9xf32, #tpu.memory_space<vmem>>, vector<2x16x9xf32>
    %cst_60 = arith.constant 0.000000e+00 : f32
    %108 = vector.broadcast %cst_60 : f32 to vector<2x16x9xf32>
    %109 = arith.select %106, %107, %108 : vector<2x16x9xi1>, vector<2x16x9xf32>
    %110 = arith.addf %104, %109 : vector<2x16x9xf32>
    %c4_i32 = arith.constant 4 : i32
    %111 = vector.broadcast %c4_i32 : i32 to vector<2x16x9xi32>
    %112 = arith.cmpi eq, %85, %111 : vector<2x16x9xi32>
    %c0_61 = arith.constant 0 : index
    %c4_62 = arith.constant 4 : index
    %c0_63 = arith.constant 0 : index
    %113 = vector.load %arg8[%c0_61, %c4_62, %c0_63] : memref<2x24x9xf32, #tpu.memory_space<vmem>>, vector<2x16x9xf32>
    %cst_64 = arith.constant 0.000000e+00 : f32
    %114 = vector.broadcast %cst_64 : f32 to vector<2x16x9xf32>
    %115 = arith.select %112, %113, %114 : vector<2x16x9xi1>, vector<2x16x9xf32>
    %116 = arith.addf %110, %115 : vector<2x16x9xf32>
    %c5_i32 = arith.constant 5 : i32
    %117 = vector.broadcast %c5_i32 : i32 to vector<2x16x9xi32>
    %118 = arith.cmpi eq, %85, %117 : vector<2x16x9xi32>
    %c0_65 = arith.constant 0 : index
    %c5_66 = arith.constant 5 : index
    %c0_67 = arith.constant 0 : index
    %119 = vector.load %arg8[%c0_65, %c5_66, %c0_67] : memref<2x24x9xf32, #tpu.memory_space<vmem>>, vector<2x16x9xf32>
    %cst_68 = arith.constant 0.000000e+00 : f32
    %120 = vector.broadcast %cst_68 : f32 to vector<2x16x9xf32>
    %121 = arith.select %118, %119, %120 : vector<2x16x9xi1>, vector<2x16x9xf32>
    %122 = arith.addf %116, %121 : vector<2x16x9xf32>
    %c6_i32 = arith.constant 6 : i32
    %123 = vector.broadcast %c6_i32 : i32 to vector<2x16x9xi32>
    %124 = arith.cmpi eq, %85, %123 : vector<2x16x9xi32>
    %c0_69 = arith.constant 0 : index
    %c6_70 = arith.constant 6 : index
    %c0_71 = arith.constant 0 : index
    %125 = vector.load %arg8[%c0_69, %c6_70, %c0_71] : memref<2x24x9xf32, #tpu.memory_space<vmem>>, vector<2x16x9xf32>
    %cst_72 = arith.constant 0.000000e+00 : f32
    %126 = vector.broadcast %cst_72 : f32 to vector<2x16x9xf32>
    %127 = arith.select %124, %125, %126 : vector<2x16x9xi1>, vector<2x16x9xf32>
    %128 = arith.addf %122, %127 : vector<2x16x9xf32>
    %c7_i32 = arith.constant 7 : i32
    %129 = vector.broadcast %c7_i32 : i32 to vector<2x16x9xi32>
    %130 = arith.cmpi eq, %85, %129 : vector<2x16x9xi32>
    %c0_73 = arith.constant 0 : index
    %c7_74 = arith.constant 7 : index
    %c0_75 = arith.constant 0 : index
    %131 = vector.load %arg8[%c0_73, %c7_74, %c0_75] : memref<2x24x9xf32, #tpu.memory_space<vmem>>, vector<2x16x9xf32>
    %cst_76 = arith.constant 0.000000e+00 : f32
    %132 = vector.broadcast %cst_76 : f32 to vector<2x16x9xf32>
    %133 = arith.select %130, %131, %132 : vector<2x16x9xi1>, vector<2x16x9xf32>
    %134 = arith.addf %128, %133 : vector<2x16x9xf32>
    %c8_i32 = arith.constant 8 : i32
    %135 = vector.broadcast %c8_i32 : i32 to vector<2x16x9xi32>
    %136 = arith.cmpi eq, %85, %135 : vector<2x16x9xi32>
    %c0_77 = arith.constant 0 : index
    %c8_78 = arith.constant 8 : index
    %c0_79 = arith.constant 0 : index
    %137 = vector.load %arg8[%c0_77, %c8_78, %c0_79] : memref<2x24x9xf32, #tpu.memory_space<vmem>>, vector<2x16x9xf32>
    %cst_80 = arith.constant 0.000000e+00 : f32
    %138 = vector.broadcast %cst_80 : f32 to vector<2x16x9xf32>
    %139 = arith.select %136, %137, %138 : vector<2x16x9xi1>, vector<2x16x9xf32>
    %140 = arith.addf %134, %139 : vector<2x16x9xf32>
    %cst_81 = arith.constant dense<0.000000e+00> : vector<2x16xf32>
    %141 = vector.multi_reduction <add>, %140, %cst_81 [2] : vector<2x16x9xf32> to vector<2x16xf32>
    %c0_82 = arith.constant 0 : index
    %142 = memref.load %arg6[%c0_82] : memref<2xf32, #tpu.memory_space<smem>>
    %143 = vector.broadcast %142 : f32 to vector<2x16xf32>
    %144 = arith.mulf %141, %143 : vector<2x16xf32>
    %c1_83 = arith.constant 1 : index
    %145 = memref.load %arg6[%c1_83] : memref<2xf32, #tpu.memory_space<smem>>
    %146 = vector.broadcast %145 : f32 to vector<2x16xf32>
    %147 = arith.addf %144, %146 : vector<2x16xf32>
    %cst_84 = arith.constant 0.000000e+00 : f32
    %148 = vector.broadcast %cst_84 : f32 to vector<2x16xf32>
    %149 = arith.maximumf %147, %148 : vector<2x16xf32>
    %c0_85 = arith.constant 0 : index
    %c0_86 = arith.constant 0 : index
    %150 = vector.load %arg7[%c0_85, %c0_86] : memref<2x16xf32, #tpu.memory_space<vmem>>, vector<2x16xf32>
    tpu.vector_store %arg7[%c0_85, %c0_86], %149 {strides = array<i32>} : memref<2x16xf32, #tpu.memory_space<vmem>>, vector<2x16xf32>,
    return
  }
  func.func @transform_0(%arg0: i32) -> (i32, i32, i32) {
    %c0_i32 = arith.constant 0 : i32
    %c0_i32_0 = arith.constant 0 : i32
    %c0_i32_1 = arith.constant 0 : i32
    return %arg0, %c0_i32, %c0_i32_0 : i32, i32, i32
  }
  func.func @transform_1(%arg0: i32) -> (i32, i32, i32) {
    %c0_i32 = arith.constant 0 : i32
    %c0_i32_0 = arith.constant 0 : i32
    %c0_i32_1 = arith.constant 0 : i32
    %c0_i32_2 = arith.constant 0 : i32
    return %c0_i32, %c0_i32_0, %c0_i32_1 : i32, i32, i32
  }
  func.func @transform_2(%arg0: i32) -> (i32, i32) {
    %c0_i32 = arith.constant 0 : i32
    %c0_i32_0 = arith.constant 0 : i32
    %c0_i32_1 = arith.constant 0 : i32
    return %c0_i32, %c0_i32_0 : i32, i32
  }
  func.func @transform_3(%arg0: i32) -> (i32, i32) {
    %c0_i32 = arith.constant 0 : i32
    %c0_i32_0 = arith.constant 0 : i32
    %c0_i32_1 = arith.constant 0 : i32
    return %c0_i32, %c0_i32_0 : i32, i32
  }
  func.func @transform_4(%arg0: i32) -> (i32, i32) {
    %c0_i32 = arith.constant 0 : i32
    %c0_i32_0 = arith.constant 0 : i32
    %c0_i32_1 = arith.constant 0 : i32
    return %c0_i32, %c0_i32_0 : i32, i32
  }
  func.func @transform_5(%arg0: i32) -> i32 {
    %c0_i32 = arith.constant 0 : i32
    %c0_i32_0 = arith.constant 0 : i32
    return %c0_i32 : i32
  }
  func.func @transform_6(%arg0: i32) -> (i32, i32) {
    %c0_i32 = arith.constant 0 : i32
    %c0_i32_0 = arith.constant 0 : i32
    return %arg0, %c0_i32 : i32, i32
  }
}

</mosaic_0001>

<llo_original>
// kernel: tpu_custom_call.1
$region0: #{tpu_custom_call.1}
  #allocation0 [shape = 'u32[]', space=smem, size = 0x4, offset = 0x4, fixed_abs, tag = 'smem constant byte address 0x4 - core index']
  #allocation1 [shape = 'u32[144,128]{1,0:T(1,128)}', space=vmem, size = 0x12000, scoped, tag = 'internal scratch']
  #allocation2 [shape = 'f32[2,24,9]{2,1,0:T(8,128)}', space=vmem, size = 0x6000, scoped, tag = 'scratch operand']
  %s0 = inlined_call_operand.vmem [shape: bf16[2,24,128], index: 0, kind: input, shape index: {}]
  %s1 = inlined_call_operand.hbm [shape: bf16[9,128,128], index: 1, kind: input, shape index: {}]
  %s2 = inlined_call_operand.vmem [shape: f32[1,128], index: 2, kind: input, shape index: {}]
  %s3 = inlined_call_operand.vmem [shape: f32[1,128], index: 3, kind: input, shape index: {}]
  %s4 = inlined_call_operand.vmem [shape: f32[128,9], index: 4, kind: input, shape index: {}]
  %s5 = inlined_call_operand.vmem [shape: f32[2], index: 5, kind: input, shape index: {}]
  %s6 = inlined_call_operand.hbm [shape: f32[2,16], index: 6, kind: output, shape index: {}]
  %s7 = sld [smem:[#allocation0]]
  $region46: #{tpu_custom_call.1} parent=0
    _
  %s9 = ssub.s32 1, %s7
  %s10 = scalar_select 0, %s9, %s7
  $region1: #{tpu_custom_call.1} parent=0
    #allocation3 [shape = 'u8[294912]{0}', space=vmem, size = 0x48000, scoped, tag = 'input window, operand 1, single buffered']
    #allocation4 [shape = 's32[1]{0}', space=sflag, size = 0x4, scoped, tag = 'scoped memory for tpu_custom_call.1']
    #allocation5 [shape = 's32[1]{0}', space=sflag, size = 0x4, scoped, tag = 'scoped memory for tpu_custom_call.1']
    #allocation6 [shape = 's32[1]{0}', space=sflag, size = 0x4, scoped, tag = 'scoped memory for tpu_custom_call.1']
    #allocation7 [shape = 'u8[512]{0}', space=smem, size = 0x200, scoped, tag = 'input window, operand 5, single buffered']
    #allocation8 [shape = 'u8[1024]{0}', space=vmem, size = 0x400, scoped, tag = 'output window, operand 0, single buffered']
    %11 = vsyncpa [#allocation4], 0
    %12 = vsyncpa [#allocation6], 0
    %13 = vsyncpa [#allocation5], 0
    // Predicated region
    $region2: #{tpu_custom_call.1} parent=1 // pred_check
      _
    $region3: #{tpu_custom_call.1} parent=1 // pred_check_branch
      %15 = sbr.rel (0) target = $region5
    $region4: #{tpu_custom_call.1} parent=1 // pred_region
      _
    $region5: #{tpu_custom_call.1} parent=1 // pred_fallthru
      _
    // Predicated region
    $region6: #{tpu_custom_call.1} parent=1 // pred_check
      _
    $region7: #{tpu_custom_call.1} parent=1 // pred_check_branch
      %17 = sbr.rel (0) target = $region9
    $region8: #{tpu_custom_call.1} parent=1 // pred_region
      %s19 = ssub.s32 9216, 9216
      %20 = vsyncadd [#allocation4], %s19
      %s21 = sshll.u32 [#allocation3], 4
      %s22 = int_to_ptr.vmem [resolvable:$true] %s21
      %27 = dma.hbm_to_vmem [thread:$0]  %s1, 9216, %s22, [#allocation4], 64, 64, 4
    $region9: #{tpu_custom_call.1} parent=1 // pred_fallthru
      _
    // Predicated region
    $region10: #{tpu_custom_call.1} parent=1 // pred_check
      _
    $region11: #{tpu_custom_call.1} parent=1 // pred_check_branch
      %29 = sbr.rel (0) target = $region13
    $region12: #{tpu_custom_call.1} parent=1 // pred_region
      _
    $region13: #{tpu_custom_call.1} parent=1 // pred_fallthru
      _
    // Predicated region
    $region14: #{tpu_custom_call.1} parent=1 // pred_check
      _
    $region15: #{tpu_custom_call.1} parent=1 // pred_check_branch
      %31 = sbr.rel (0) target = $region17
    $region16: #{tpu_custom_call.1} parent=1 // pred_region
      _
    $region17: #{tpu_custom_call.1} parent=1 // pred_fallthru
      _
    // Predicated region
    $region18: #{tpu_custom_call.1} parent=1 // pred_check
      _
    $region19: #{tpu_custom_call.1} parent=1 // pred_check_branch
      %33 = sbr.rel (0) target = $region21
    $region20: #{tpu_custom_call.1} parent=1 // pred_region
      _
    $region21: #{tpu_custom_call.1} parent=1 // pred_fallthru
      _
    // Predicated region
    $region22: #{tpu_custom_call.1} parent=1 // pred_check
      _
    $region23: #{tpu_custom_call.1} parent=1 // pred_check_branch
      %35 = sbr.rel (0) target = $region25
    $region24: #{tpu_custom_call.1} parent=1 // pred_region
      %s37 = ssub.s32 16, 16
      %38 = vsyncadd [#allocation6], %s37
      %s40 = sshll.u32 %s5, 4
      %s41 = int_to_ptr.vmem [resolvable:$true] %s40
      %43 = dma.vmem_to_smem %s41, 16, [#allocation7], [#allocation6]
    $region25: #{tpu_custom_call.1} parent=1 // pred_fallthru
      _
    // Predicated region
    $region26: #{tpu_custom_call.1} parent=1 // pred_check
      _
    $region27: #{tpu_custom_call.1} parent=1 // pred_check_branch
      %45 = sbr.rel (0) target = $region29
    $region28: #{tpu_custom_call.1} parent=1 // pred_region
      %46 = dma.done [#allocation4], 9216
    $region29: #{tpu_custom_call.1} parent=1 // pred_fallthru
      _
    // Predicated region
    $region30: #{tpu_custom_call.1} parent=1 // pred_check
      _
    $region31: #{tpu_custom_call.1} parent=1 // pred_check_branch
      %48 = sbr.rel (0) target = $region33
    $region32: #{tpu_custom_call.1} parent=1 // pred_region
      %49 = dma.done [#allocation6], 16
    $region33: #{tpu_custom_call.1} parent=1 // pred_fallthru
      _
    %50 = sfence
    %p52 = scmp.eq.s32.totalorder 0, 0
    // Predicated region
    $region34: #{tpu_custom_call.1} parent=1 // pred_check
      %p53 = pneg %p52
    $region35: #{tpu_custom_call.1} parent=1 // pred_check_branch
      %55 = sbr.rel (%p53) target = $region37
    $region36: #{tpu_custom_call.1} parent=1 // pred_region
      %vm56 = vcmask 72704
      %57 = vst.msk [vmem:[#allocation2] sm:$0xff] %vm56, 0.0
      %58 = vst.msk [vmem:[#allocation2 + $0x8] sm:$0xff] %vm56, 0.0
      %59 = vst.msk [vmem:[#allocation2 + $0x10] sm:$0xff] %vm56, 0.0
      %60 = vst.msk [vmem:[#allocation2 + $0x18] sm:$0xff] %vm56, 0.0
      %61 = vst.msk [vmem:[#allocation2 + $0x20] sm:$0xff] %vm56, 0.0
      %62 = vst.msk [vmem:[#allocation2 + $0x28] sm:$0xff] %vm56, 0.0
    $region37: #{tpu_custom_call.1} parent=1 // pred_fallthru
      _
    %v63 = vld [vmem:[%s0] sm:$0xf]
    %v64 = vld [vmem:[%s0 + $0x4] sm:$0xf]
    %v65 = vld [vmem:[%s0 + $0x8] sm:$0xf]
    %v66 = vld [vmem:[%s0 + $0xc] sm:$0xf]
    %v67 = vld [vmem:[%s0 + $0x10] sm:$0xf]
    %v68 = vld [vmem:[%s0 + $0x14] sm:$0xf]
    %v69 = vld [vmem:[#allocation3] sm:$0xf]
    %v70 = vld [vmem:[#allocation3 + $0x4] sm:$0xf]
    %v71 = vld [vmem:[#allocation3 + $0x8] sm:$0xf]
    %v72 = vld [vmem:[#allocation3 + $0xc] sm:$0xf]
    %v73 = vld [vmem:[#allocation3 + $0x10] sm:$0xf]
    %v74 = vld [vmem:[#allocation3 + $0x14] sm:$0xf]
    %v75 = vld [vmem:[#allocation3 + $0x18] sm:$0xf]
    %v76 = vld [vmem:[#allocation3 + $0x1c] sm:$0xf]
    %v77 = vld [vmem:[#allocation3 + $0x20] sm:$0xf]
    %v78 = vld [vmem:[#allocation3 + $0x24] sm:$0xf]
    %v79 = vld [vmem:[#allocation3 + $0x28] sm:$0xf]
    %v80 = vld [vmem:[#allocation3 + $0x2c] sm:$0xf]
    %v81 = vld [vmem:[#allocation3 + $0x30] sm:$0xf]
    %v82 = vld [vmem:[#allocation3 + $0x34] sm:$0xf]
    %v83 = vld [vmem:[#allocation3 + $0x38] sm:$0xf]
    %v84 = vld [vmem:[#allocation3 + $0x3c] sm:$0xf]
    %vm85 = vsmask.f32 3328
    %vm86 = vsmask.f32 7440
    %vm87 = vmor %vm85, %vm86
    %v89 = vshrl.u32 %v63, 16
    %v91 = vrot.slane %v89, 4
    %v92 = vshll.u32 %v63, 16
    %v94 = vrot.slane %v92, 5
    %v95 = vor.u32 %v91, %v94
    %v96 = vrot.slane %v95, 4
    %v98 = vshll.u32 %v64, 16
    %v100 = vrot.slane %v98, 5
    %v101 = vsel %vm87, %v96, %v100
    %v102 = vshrl.u32 %v64, 16
    %v104 = vrot.slane %v102, 4
    %v105 = vor.u32 %v104, %v100
    %v106 = vrot.slane %v105, 4
    %v108 = vshll.u32 %v65, 16
    %v110 = vrot.slane %v108, 5
    %v111 = vsel %vm87, %v106, %v110
    %v113 = vshrl.u32 %v66, 16
    %v115 = vrot.slane %v113, 4
    %v116 = vshll.u32 %v66, 16
    %v118 = vrot.slane %v116, 5
    %v119 = vor.u32 %v115, %v118
    %v120 = vrot.slane %v119, 4
    %v122 = vshll.u32 %v67, 16
    %v124 = vrot.slane %v122, 5
    %v125 = vsel %vm87, %v120, %v124
    %v126 = vshrl.u32 %v67, 16
    %v128 = vrot.slane %v126, 4
    %v129 = vor.u32 %v128, %v124
    %v130 = vrot.slane %v129, 4
    %v132 = vshll.u32 %v68, 16
    %v134 = vrot.slane %v132, 5
    %v135 = vsel %vm87, %v130, %v134
    %s136 = scalar_lea.vmem [#allocation3], 64
    %v137 = vld [vmem:[%s136] sm:$0xf]
    %v138 = vld [vmem:[%s136 + $0x4] sm:$0xf]
    %v139 = vld [vmem:[%s136 + $0x8] sm:$0xf]
    %v140 = vld [vmem:[%s136 + $0xc] sm:$0xf]
    %v141 = vld [vmem:[%s136 + $0x10] sm:$0xf]
    %v142 = vld [vmem:[%s136 + $0x14] sm:$0xf]
    %v143 = vld [vmem:[%s136 + $0x18] sm:$0xf]
    %v144 = vld [vmem:[%s136 + $0x1c] sm:$0xf]
    %v145 = vld [vmem:[%s136 + $0x20] sm:$0xf]
    %v146 = vld [vmem:[%s136 + $0x24] sm:$0xf]
    %v147 = vld [vmem:[%s136 + $0x28] sm:$0xf]
    %v148 = vld [vmem:[%s136 + $0x2c] sm:$0xf]
    %v149 = vld [vmem:[%s136 + $0x30] sm:$0xf]
    %v150 = vld [vmem:[%s136 + $0x34] sm:$0xf]
    %v151 = vld [vmem:[%s136 + $0x38] sm:$0xf]
    %v152 = vld [vmem:[%s136 + $0x3c] sm:$0xf]
    %v153 = vunpack.c.l.b16 %v101
    %v154 = vunpack.c.l.b16 %v111
    %v155 = vunpack.c.l.b16 %v125
    %v156 = vunpack.c.l.b16 %v135
    %v157 = vpack.c.b16 %v154, %v153
    %v158 = vpack.c.b16 %v156, %v155
    %v177 = vunpack.c.l.b16 %v137
    %v178 = vunpack.c.l.b16 %v138
    %v179 = vunpack.c.l.b16 %v139
    %v180 = vunpack.c.l.b16 %v140
    %v181 = vunpack.c.l.b16 %v141
    %v182 = vunpack.c.l.b16 %v142
    %v183 = vunpack.c.l.b16 %v143
    %v184 = vunpack.c.l.b16 %v144
    %v185 = vunpack.c.l.b16 %v145
    %v186 = vunpack.c.l.b16 %v146
    %v187 = vunpack.c.l.b16 %v147
    %v188 = vunpack.c.l.b16 %v148
    %v189 = vunpack.c.l.b16 %v149
    %v190 = vunpack.c.l.b16 %v150
    %v191 = vunpack.c.l.b16 %v151
    %v192 = vunpack.c.l.b16 %v152
    %v193 = vpack.c.b16 %v178, %v177
    %v194 = vpack.c.b16 %v180, %v179
    %v195 = vpack.c.b16 %v182, %v181
    %v196 = vpack.c.b16 %v184, %v183
    %v197 = vpack.c.b16 %v186, %v185
    %v198 = vpack.c.b16 %v188, %v187
    %v199 = vpack.c.b16 %v190, %v189
    %v200 = vpack.c.b16 %v192, %v191
    %209 = vmatprep.subr.bf16.mxu0 0
    %210 = vmatpush1.bf16.msra.mxu0 %v193
    %211 = vmatprep.subr.bf16.mxu0 0
    %212 = vmatpush1.bf16.msra.mxu0 %v194
    %213 = vmatprep.subr.bf16.mxu0 0
    %214 = vmatpush1.bf16.msra.mxu0 %v195
    %215 = vmatprep.subr.bf16.mxu0 0
    %216 = vmatpush1.bf16.msra.mxu0 %v196
    %217 = vmatprep.subr.bf16.mxu0 0
    %218 = vmatpush1.bf16.msra.mxu0 %v197
    %219 = vmatprep.subr.bf16.mxu0 0
    %220 = vmatpush1.bf16.msra.mxu0 %v198
    %221 = vmatprep.subr.bf16.mxu0 0
    %222 = vmatpush1.bf16.msra.mxu0 %v199
    %223 = vmatprep.subr.bf16.mxu0 0
    %224 = vmatpush1.bf16.msra.mxu0 %v200
    %225 = vmatprep.subr.bf16.mxu0 0
    %226 = vmatpush1.bf16.msra.mxu0 0
    %227 = vmatprep.subr.bf16.mxu0 0
    %228 = vmatpush1.bf16.msra.mxu0 0
    %229 = vmatprep.subr.bf16.mxu0 0
    %230 = vmatpush1.bf16.msra.mxu0 0
    %231 = vmatprep.subr.bf16.mxu0 0
    %232 = vmatpush1.bf16.msra.mxu0 0
    %233 = vmatprep.subr.bf16.mxu0 0
    %234 = vmatpush1.bf16.msra.mxu0 0
    %235 = vmatprep.subr.bf16.mxu0 0
    %236 = vmatpush1.bf16.msra.mxu0 0
    %237 = vmatprep.subr.bf16.mxu0 0
    %238 = vmatpush1.bf16.msra.mxu0 0
    %239 = vmatprep.subr.bf16.mxu0 0
    %240 = vmatpush1.bf16.msra.mxu0 0
    %241 = vmatprep.mubr.bf16.mxu0 0
    %242 = vmatmul.mubr.bf16.gmra.mrb[0].mxu0 %v157
    %v243 = vpop.f32.mrb[0].mxu0
    %v244 = vadd.f32 0.0, %v243
    %v245 = vpop.f32.mrb[0].mxu0
    %v246 = vpop.f32.mrb[0].mxu0
    %v247 = vadd.f32 0.0, %v246
    %v248 = vpop.f32.mrb[0].mxu0
    %249 = vmatprep.mubr.bf16.mxu0 0
    %250 = vmatmul.mubr.bf16.gmra.mrb[0].mxu0 %v158
    %v251 = vpop.f32.mrb[0].mxu0
    %v252 = vadd.f32 0.0, %v251
    %v253 = vpop.f32.mrb[0].mxu0
    %v254 = vpop.f32.mrb[0].mxu0
    %v255 = vadd.f32 0.0, %v254
    %v256 = vpop.f32.mrb[0].mxu0
    %257 = vdwg.mxu0
    %v262 = vunpack.c.l.b16 %v63
    %v263 = vunpack.c.l.b16 %v64
    %v264 = vunpack.c.l.b16 %v66
    %v265 = vunpack.c.l.b16 %v67
    %v266 = vpack.c.b16 %v263, %v262
    %v267 = vpack.c.b16 %v265, %v264
    %v286 = vunpack.c.l.b16 %v69
    %v287 = vunpack.c.l.b16 %v70
    %v288 = vunpack.c.l.b16 %v71
    %v289 = vunpack.c.l.b16 %v72
    %v290 = vunpack.c.l.b16 %v73
    %v291 = vunpack.c.l.b16 %v74
    %v292 = vunpack.c.l.b16 %v75
    %v293 = vunpack.c.l.b16 %v76
    %v294 = vunpack.c.l.b16 %v77
    %v295 = vunpack.c.l.b16 %v78
    %v296 = vunpack.c.l.b16 %v79
    %v297 = vunpack.c.l.b16 %v80
    %v298 = vunpack.c.l.b16 %v81
    %v299 = vunpack.c.l.b16 %v82
    %v300 = vunpack.c.l.b16 %v83
    %v301 = vunpack.c.l.b16 %v84
    %v302 = vpack.c.b16 %v287, %v286
    %v303 = vpack.c.b16 %v289, %v288
    %v304 = vpack.c.b16 %v291, %v290
    %v305 = vpack.c.b16 %v293, %v292
    %v306 = vpack.c.b16 %v295, %v294
    %v307 = vpack.c.b16 %v297, %v296
    %v308 = vpack.c.b16 %v299, %v298
    %v309 = vpack.c.b16 %v301, %v300
    %318 = vmatprep.subr.bf16.mxu0 0
    %319 = vmatpush1.bf16.msra.mxu0 %v302
    %320 = vmatprep.subr.bf16.mxu0 0
    %321 = vmatpush1.bf16.msra.mxu0 %v303
    %322 = vmatprep.subr.bf16.mxu0 0
    %323 = vmatpush1.bf16.msra.mxu0 %v304
    %324 = vmatprep.subr.bf16.mxu0 0
    %325 = vmatpush1.bf16.msra.mxu0 %v305
    %326 = vmatprep.subr.bf16.mxu0 0
    %327 = vmatpush1.bf16.msra.mxu0 %v306
    %328 = vmatprep.subr.bf16.mxu0 0
    %329 = vmatpush1.bf16.msra.mxu0 %v307
    %330 = vmatprep.subr.bf16.mxu0 0
    %331 = vmatpush1.bf16.msra.mxu0 %v308
    %332 = vmatprep.subr.bf16.mxu0 0
    %333 = vmatpush1.bf16.msra.mxu0 %v309
    %334 = vmatprep.subr.bf16.mxu0 0
    %335 = vmatpush1.bf16.msra.mxu0 0
    %336 = vmatprep.subr.bf16.mxu0 0
    %337 = vmatpush1.bf16.msra.mxu0 0
    %338 = vmatprep.subr.bf16.mxu0 0
    %339 = vmatpush1.bf16.msra.mxu0 0
    %340 = vmatprep.subr.bf16.mxu0 0
    %341 = vmatpush1.bf16.msra.mxu0 0
    %342 = vmatprep.subr.bf16.mxu0 0
    %343 = vmatpush1.bf16.msra.mxu0 0
    %344 = vmatprep.subr.bf16.mxu0 0
    %345 = vmatpush1.bf16.msra.mxu0 0
    %346 = vmatprep.subr.bf16.mxu0 0
    %347 = vmatpush1.bf16.msra.mxu0 0
    %348 = vmatprep.subr.bf16.mxu0 0
    %349 = vmatpush1.bf16.msra.mxu0 0
    %350 = vmatprep.mubr.bf16.mxu0 0
    %351 = vmatmul.mubr.bf16.gmra.mrb[0].mxu0 %v266
    %v352 = vpop.f32.mrb[0].mxu0
    %v353 = vadd.f32 %v244, %v352
    %v354 = vpop.f32.mrb[0].mxu0
    %v355 = vpop.f32.mrb[0].mxu0
    %v356 = vadd.f32 %v247, %v355
    %v357 = vpop.f32.mrb[0].mxu0
    %358 = vmatprep.mubr.bf16.mxu0 0
    %359 = vmatmul.mubr.bf16.gmra.mrb[0].mxu0 %v267
    %v360 = vpop.f32.mrb[0].mxu0
    %v361 = vadd.f32 %v252, %v360
    %v362 = vpop.f32.mrb[0].mxu0
    %v363 = vpop.f32.mrb[0].mxu0
    %v364 = vadd.f32 %v255, %v363
    %v365 = vpop.f32.mrb[0].mxu0
    %366 = vdwg.mxu0
    %vm369 = vcmask 1042432
    %vm370 = vcmask 1046532
    %vm371 = vmor %vm369, %vm370
    %v372 = vrot.slane %v63, 5
    %v373 = vrot.slane %v372, 4
    %v374 = vrot.slane %v64, 5
    %v375 = vsel %vm371, %v373, %v374
    %v376 = vrot.slane %v374, 4
    %v377 = vrot.slane %v65, 5
    %v378 = vsel %vm371, %v376, %v377
    %v379 = vrot.slane %v66, 5
    %v380 = vrot.slane %v379, 4
    %v381 = vrot.slane %v67, 5
    %v382 = vsel %vm371, %v380, %v381
    %v383 = vrot.slane %v381, 4
    %v384 = vrot.slane %v68, 5
    %v385 = vsel %vm371, %v383, %v384
    %s386 = scalar_lea.vmem [#allocation3], 128
    %v387 = vld [vmem:[%s386] sm:$0xf]
    %v388 = vld [vmem:[%s386 + $0x4] sm:$0xf]
    %v389 = vld [vmem:[%s386 + $0x8] sm:$0xf]
    %v390 = vld [vmem:[%s386 + $0xc] sm:$0xf]
    %v391 = vld [vmem:[%s386 + $0x10] sm:$0xf]
    %v392 = vld [vmem:[%s386 + $0x14] sm:$0xf]
    %v393 = vld [vmem:[%s386 + $0x18] sm:$0xf]
    %v394 = vld [vmem:[%s386 + $0x1c] sm:$0xf]
    %v395 = vld [vmem:[%s386 + $0x20] sm:$0xf]
    %v396 = vld [vmem:[%s386 + $0x24] sm:$0xf]
    %v397 = vld [vmem:[%s386 + $0x28] sm:$0xf]
    %v398 = vld [vmem:[%s386 + $0x2c] sm:$0xf]
    %v399 = vld [vmem:[%s386 + $0x30] sm:$0xf]
    %v400 = vld [vmem:[%s386 + $0x34] sm:$0xf]
    %v401 = vld [vmem:[%s386 + $0x38] sm:$0xf]
    %v402 = vld [vmem:[%s386 + $0x3c] sm:$0xf]
    %v403 = vunpack.c.l.b16 %v375
    %v404 = vunpack.c.l.b16 %v378
    %v405 = vunpack.c.l.b16 %v382
    %v406 = vunpack.c.l.b16 %v385
    %v407 = vpack.c.b16 %v404, %v403
    %v408 = vpack.c.b16 %v406, %v405
    %v427 = vunpack.c.l.b16 %v387
    %v428 = vunpack.c.l.b16 %v388
    %v429 = vunpack.c.l.b16 %v389
    %v430 = vunpack.c.l.b16 %v390
    %v431 = vunpack.c.l.b16 %v391
    %v432 = vunpack.c.l.b16 %v392
    %v433 = vunpack.c.l.b16 %v393
    %v434 = vunpack.c.l.b16 %v394
    %v435 = vunpack.c.l.b16 %v395
    %v436 = vunpack.c.l.b16 %v396
    %v437 = vunpack.c.l.b16 %v397
    %v438 = vunpack.c.l.b16 %v398
    %v439 = vunpack.c.l.b16 %v399
    %v440 = vunpack.c.l.b16 %v400
    %v441 = vunpack.c.l.b16 %v401
    %v442 = vunpack.c.l.b16 %v402
    %v443 = vpack.c.b16 %v428, %v427
    %v444 = vpack.c.b16 %v430, %v429
    %v445 = vpack.c.b16 %v432, %v431
    %v446 = vpack.c.b16 %v434, %v433
    %v447 = vpack.c.b16 %v436, %v435
    %v448 = vpack.c.b16 %v438, %v437
    %v449 = vpack.c.b16 %v440, %v439
    %v450 = vpack.c.b16 %v442, %v441
    %459 = vmatprep.subr.bf16.mxu0 0
    %460 = vmatpush1.bf16.msra.mxu0 %v443
    %461 = vmatprep.subr.bf16.mxu0 0
    %462 = vmatpush1.bf16.msra.mxu0 %v444
    %463 = vmatprep.subr.bf16.mxu0 0
    %464 = vmatpush1.bf16.msra.mxu0 %v445
    %465 = vmatprep.subr.bf16.mxu0 0
    %466 = vmatpush1.bf16.msra.mxu0 %v446
    %467 = vmatprep.subr.bf16.mxu0 0
    %468 = vmatpush1.bf16.msra.mxu0 %v447
    %469 = vmatprep.subr.bf16.mxu0 0
    %470 = vmatpush1.bf16.msra.mxu0 %v448
    %471 = vmatprep.subr.bf16.mxu0 0
    %472 = vmatpush1.bf16.msra.mxu0 %v449
    %473 = vmatprep.subr.bf16.mxu0 0
    %474 = vmatpush1.bf16.msra.mxu0 %v450
    %475 = vmatprep.subr.bf16.mxu0 0
    %476 = vmatpush1.bf16.msra.mxu0 0
    %477 = vmatprep.subr.bf16.mxu0 0
    %478 = vmatpush1.bf16.msra.mxu0 0
    %479 = vmatprep.subr.bf16.mxu0 0
    %480 = vmatpush1.bf16.msra.mxu0 0
    %481 = vmatprep.subr.bf16.mxu0 0
    %482 = vmatpush1.bf16.msra.mxu0 0
    %483 = vmatprep.subr.bf16.mxu0 0
    %484 = vmatpush1.bf16.msra.mxu0 0
    %485 = vmatprep.subr.bf16.mxu0 0
    %486 = vmatpush1.bf16.msra.mxu0 0
    %487 = vmatprep.subr.bf16.mxu0 0
    %488 = vmatpush1.bf16.msra.mxu0 0
    %489 = vmatprep.subr.bf16.mxu0 0
    %490 = vmatpush1.bf16.msra.mxu0 0
    %491 = vmatprep.mubr.bf16.mxu0 0
    %492 = vmatmul.mubr.bf16.gmra.mrb[0].mxu0 %v407
    %v493 = vpop.f32.mrb[0].mxu0
    %v494 = vadd.f32 0.0, %v493
    %v495 = vpop.f32.mrb[0].mxu0
    %v496 = vpop.f32.mrb[0].mxu0
    %v497 = vadd.f32 0.0, %v496
    %v498 = vpop.f32.mrb[0].mxu0
    %499 = vmatprep.mubr.bf16.mxu0 0
    %500 = vmatmul.mubr.bf16.gmra.mrb[0].mxu0 %v408
    %v501 = vpop.f32.mrb[0].mxu0
    %v502 = vadd.f32 0.0, %v501
    %v503 = vpop.f32.mrb[0].mxu0
    %v504 = vpop.f32.mrb[0].mxu0
    %v505 = vadd.f32 0.0, %v504
    %v506 = vpop.f32.mrb[0].mxu0
    %507 = vdwg.mxu0
    %v508 = vadd.f32 %v353, %v494
    %v509 = vadd.f32 %v356, %v497
    %v510 = vadd.f32 %v361, %v502
    %v511 = vadd.f32 %v364, %v505
    %vm512 = vsmask.f32 2304
    %vm513 = vsmask.f32 6416
    %vm514 = vmor %vm512, %vm513
    %v515 = vrot.slane %v89, 5
    %v516 = vrot.slane %v92, 6
    %v517 = vor.u32 %v515, %v516
    %v518 = vrot.slane %v517, 4
    %v519 = vrot.slane %v102, 5
    %v520 = vrot.slane %v98, 6
    %v521 = vor.u32 %v519, %v520
    %v522 = vsel %vm514, %v518, %v521
    %v523 = vrot.slane %v521, 4
    %v524 = vshrl.u32 %v65, 16
    %v526 = vrot.slane %v524, 5
    %v527 = vrot.slane %v108, 6
    %v528 = vor.u32 %v526, %v527
    %v529 = vsel %vm514, %v523, %v528
    %v530 = vrot.slane %v113, 5
    %v531 = vrot.slane %v116, 6
    %v532 = vor.u32 %v530, %v531
    %v533 = vrot.slane %v532, 4
    %v534 = vrot.slane %v126, 5
    %v535 = vrot.slane %v122, 6
    %v536 = vor.u32 %v534, %v535
    %v537 = vsel %vm514, %v533, %v536
    %v538 = vrot.slane %v536, 4
    %v539 = vshrl.u32 %v68, 16
    %v541 = vrot.slane %v539, 5
    %v542 = vrot.slane %v132, 6
    %v543 = vor.u32 %v541, %v542
    %v544 = vsel %vm514, %v538, %v543
    %s545 = scalar_lea.vmem [#allocation3], 192
    %v546 = vld [vmem:[%s545] sm:$0xf]
    %v547 = vld [vmem:[%s545 + $0x4] sm:$0xf]
    %v548 = vld [vmem:[%s545 + $0x8] sm:$0xf]
    %v549 = vld [vmem:[%s545 + $0xc] sm:$0xf]
    %v550 = vld [vmem:[%s545 + $0x10] sm:$0xf]
    %v551 = vld [vmem:[%s545 + $0x14] sm:$0xf]
    %v552 = vld [vmem:[%s545 + $0x18] sm:$0xf]
    %v553 = vld [vmem:[%s545 + $0x1c] sm:$0xf]
    %v554 = vld [vmem:[%s545 + $0x20] sm:$0xf]
    %v555 = vld [vmem:[%s545 + $0x24] sm:$0xf]
    %v556 = vld [vmem:[%s545 + $0x28] sm:$0xf]
    %v557 = vld [vmem:[%s545 + $0x2c] sm:$0xf]
    %v558 = vld [vmem:[%s545 + $0x30] sm:$0xf]
    %v559 = vld [vmem:[%s545 + $0x34] sm:$0xf]
    %v560 = vld [vmem:[%s545 + $0x38] sm:$0xf]
    %v561 = vld [vmem:[%s545 + $0x3c] sm:$0xf]
    %v562 = vunpack.c.l.b16 %v522
    %v563 = vunpack.c.l.b16 %v529
    %v564 = vunpack.c.l.b16 %v537
    %v565 = vunpack.c.l.b16 %v544
    %v566 = vpack.c.b16 %v563, %v562
    %v567 = vpack.c.b16 %v565, %v564
    %v586 = vunpack.c.l.b16 %v546
    %v587 = vunpack.c.l.b16 %v547
    %v588 = vunpack.c.l.b16 %v548
    %v589 = vunpack.c.l.b16 %v549
    %v590 = vunpack.c.l.b16 %v550
    %v591 = vunpack.c.l.b16 %v551
    %v592 = vunpack.c.l.b16 %v552
    %v593 = vunpack.c.l.b16 %v553
    %v594 = vunpack.c.l.b16 %v554
    %v595 = vunpack.c.l.b16 %v555
    %v596 = vunpack.c.l.b16 %v556
    %v597 = vunpack.c.l.b16 %v557
    %v598 = vunpack.c.l.b16 %v558
    %v599 = vunpack.c.l.b16 %v559
    %v600 = vunpack.c.l.b16 %v560
    %v601 = vunpack.c.l.b16 %v561
    %v602 = vpack.c.b16 %v587, %v586
    %v603 = vpack.c.b16 %v589, %v588
    %v604 = vpack.c.b16 %v591, %v590
    %v605 = vpack.c.b16 %v593, %v592
    %v606 = vpack.c.b16 %v595, %v594
    %v607 = vpack.c.b16 %v597, %v596
    %v608 = vpack.c.b16 %v599, %v598
    %v609 = vpack.c.b16 %v601, %v600
    %618 = vmatprep.subr.bf16.mxu0 0
    %619 = vmatpush1.bf16.msra.mxu0 %v602
    %620 = vmatprep.subr.bf16.mxu0 0
    %621 = vmatpush1.bf16.msra.mxu0 %v603
    %622 = vmatprep.subr.bf16.mxu0 0
    %623 = vmatpush1.bf16.msra.mxu0 %v604
    %624 = vmatprep.subr.bf16.mxu0 0
    %625 = vmatpush1.bf16.msra.mxu0 %v605
    %626 = vmatprep.subr.bf16.mxu0 0
    %627 = vmatpush1.bf16.msra.mxu0 %v606
    %628 = vmatprep.subr.bf16.mxu0 0
    %629 = vmatpush1.bf16.msra.mxu0 %v607
    %630 = vmatprep.subr.bf16.mxu0 0
    %631 = vmatpush1.bf16.msra.mxu0 %v608
    %632 = vmatprep.subr.bf16.mxu0 0
    %633 = vmatpush1.bf16.msra.mxu0 %v609
    %634 = vmatprep.subr.bf16.mxu0 0
    %635 = vmatpush1.bf16.msra.mxu0 0
    %636 = vmatprep.subr.bf16.mxu0 0
    %637 = vmatpush1.bf16.msra.mxu0 0
    %638 = vmatprep.subr.bf16.mxu0 0
    %639 = vmatpush1.bf16.msra.mxu0 0
    %640 = vmatprep.subr.bf16.mxu0 0
    %641 = vmatpush1.bf16.msra.mxu0 0
    %642 = vmatprep.subr.bf16.mxu0 0
    %643 = vmatpush1.bf16.msra.mxu0 0
    %644 = vmatprep.subr.bf16.mxu0 0
    %645 = vmatpush1.bf16.msra.mxu0 0
    %646 = vmatprep.subr.bf16.mxu0 0
    %647 = vmatpush1.bf16.msra.mxu0 0
    %648 = vmatprep.subr.bf16.mxu0 0
    %649 = vmatpush1.bf16.msra.mxu0 0
    %650 = vmatprep.mubr.bf16.mxu0 0
    %651 = vmatmul.mubr.bf16.gmra.mrb[0].mxu0 %v566
    %v652 = vpop.f32.mrb[0].mxu0
    %v653 = vadd.f32 0.0, %v652
    %v654 = vpop.f32.mrb[0].mxu0
    %v655 = vpop.f32.mrb[0].mxu0
    %v656 = vadd.f32 0.0, %v655
    %v657 = vpop.f32.mrb[0].mxu0
    %658 = vmatprep.mubr.bf16.mxu0 0
    %659 = vmatmul.mubr.bf16.gmra.mrb[0].mxu0 %v567
    %v660 = vpop.f32.mrb[0].mxu0
    %v661 = vadd.f32 0.0, %v660
    %v662 = vpop.f32.mrb[0].mxu0
    %v663 = vpop.f32.mrb[0].mxu0
    %v664 = vadd.f32 0.0, %v663
    %v665 = vpop.f32.mrb[0].mxu0
    %666 = vdwg.mxu0
    %v667 = vadd.f32 %v508, %v653
    %v668 = vadd.f32 %v509, %v656
    %v669 = vadd.f32 %v510, %v661
    %v670 = vadd.f32 %v511, %v664
    %vm671 = vcmask 1041408
    %vm672 = vcmask 1045508
    %vm673 = vmor %vm671, %vm672
    %v674 = vrot.slane %v63, 6
    %v675 = vrot.slane %v674, 4
    %v676 = vrot.slane %v64, 6
    %v677 = vsel %vm673, %v675, %v676
    %v678 = vrot.slane %v676, 4
    %v679 = vrot.slane %v65, 6
    %v680 = vsel %vm673, %v678, %v679
    %v681 = vrot.slane %v66, 6
    %v682 = vrot.slane %v681, 4
    %v683 = vrot.slane %v67, 6
    %v684 = vsel %vm673, %v682, %v683
    %v685 = vrot.slane %v683, 4
    %v686 = vrot.slane %v68, 6
    %v687 = vsel %vm673, %v685, %v686
    %s688 = scalar_lea.vmem [#allocation3], 256
    %v689 = vld [vmem:[%s688] sm:$0xf]
    %v690 = vld [vmem:[%s688 + $0x4] sm:$0xf]
    %v691 = vld [vmem:[%s688 + $0x8] sm:$0xf]
    %v692 = vld [vmem:[%s688 + $0xc] sm:$0xf]
    %v693 = vld [vmem:[%s688 + $0x10] sm:$0xf]
    %v694 = vld [vmem:[%s688 + $0x14] sm:$0xf]
    %v695 = vld [vmem:[%s688 + $0x18] sm:$0xf]
    %v696 = vld [vmem:[%s688 + $0x1c] sm:$0xf]
    %v697 = vld [vmem:[%s688 + $0x20] sm:$0xf]
    %v698 = vld [vmem:[%s688 + $0x24] sm:$0xf]
    %v699 = vld [vmem:[%s688 + $0x28] sm:$0xf]
    %v700 = vld [vmem:[%s688 + $0x2c] sm:$0xf]
    %v701 = vld [vmem:[%s688 + $0x30] sm:$0xf]
    %v702 = vld [vmem:[%s688 + $0x34] sm:$0xf]
    %v703 = vld [vmem:[%s688 + $0x38] sm:$0xf]
    %v704 = vld [vmem:[%s688 + $0x3c] sm:$0xf]
    %v705 = vunpack.c.l.b16 %v677
    %v706 = vunpack.c.l.b16 %v680
    %v707 = vunpack.c.l.b16 %v684
    %v708 = vunpack.c.l.b16 %v687
    %v709 = vpack.c.b16 %v706, %v705
    %v710 = vpack.c.b16 %v708, %v707
    %v729 = vunpack.c.l.b16 %v689
    %v730 = vunpack.c.l.b16 %v690
    %v731 = vunpack.c.l.b16 %v691
    %v732 = vunpack.c.l.b16 %v692
    %v733 = vunpack.c.l.b16 %v693
    %v734 = vunpack.c.l.b16 %v694
    %v735 = vunpack.c.l.b16 %v695
    %v736 = vunpack.c.l.b16 %v696
    %v737 = vunpack.c.l.b16 %v697
    %v738 = vunpack.c.l.b16 %v698
    %v739 = vunpack.c.l.b16 %v699
    %v740 = vunpack.c.l.b16 %v700
    %v741 = vunpack.c.l.b16 %v701
    %v742 = vunpack.c.l.b16 %v702
    %v743 = vunpack.c.l.b16 %v703
    %v744 = vunpack.c.l.b16 %v704
    %v745 = vpack.c.b16 %v730, %v729
    %v746 = vpack.c.b16 %v732, %v731
    %v747 = vpack.c.b16 %v734, %v733
    %v748 = vpack.c.b16 %v736, %v735
    %v749 = vpack.c.b16 %v738, %v737
    %v750 = vpack.c.b16 %v740, %v739
    %v751 = vpack.c.b16 %v742, %v741
    %v752 = vpack.c.b16 %v744, %v743
    %761 = vmatprep.subr.bf16.mxu0 0
    %762 = vmatpush1.bf16.msra.mxu0 %v745
    %763 = vmatprep.subr.bf16.mxu0 0
    %764 = vmatpush1.bf16.msra.mxu0 %v746
    %765 = vmatprep.subr.bf16.mxu0 0
    %766 = vmatpush1.bf16.msra.mxu0 %v747
    %767 = vmatprep.subr.bf16.mxu0 0
    %768 = vmatpush1.bf16.msra.mxu0 %v748
    %769 = vmatprep.subr.bf16.mxu0 0
    %770 = vmatpush1.bf16.msra.mxu0 %v749
    %771 = vmatprep.subr.bf16.mxu0 0
    %772 = vmatpush1.bf16.msra.mxu0 %v750
    %773 = vmatprep.subr.bf16.mxu0 0
    %774 = vmatpush1.bf16.msra.mxu0 %v751
    %775 = vmatprep.subr.bf16.mxu0 0
    %776 = vmatpush1.bf16.msra.mxu0 %v752
    %777 = vmatprep.subr.bf16.mxu0 0
    %778 = vmatpush1.bf16.msra.mxu0 0
    %779 = vmatprep.subr.bf16.mxu0 0
    %780 = vmatpush1.bf16.msra.mxu0 0
    %781 = vmatprep.subr.bf16.mxu0 0
    %782 = vmatpush1.bf16.msra.mxu0 0
    %783 = vmatprep.subr.bf16.mxu0 0
    %784 = vmatpush1.bf16.msra.mxu0 0
    %785 = vmatprep.subr.bf16.mxu0 0
    %786 = vmatpush1.bf16.msra.mxu0 0
    %787 = vmatprep.subr.bf16.mxu0 0
    %788 = vmatpush1.bf16.msra.mxu0 0
    %789 = vmatprep.subr.bf16.mxu0 0
    %790 = vmatpush1.bf16.msra.mxu0 0
    %791 = vmatprep.subr.bf16.mxu0 0
    %792 = vmatpush1.bf16.msra.mxu0 0
    %793 = vmatprep.mubr.bf16.mxu0 0
    %794 = vmatmul.mubr.bf16.gmra.mrb[0].mxu0 %v709
    %v795 = vpop.f32.mrb[0].mxu0
    %v796 = vadd.f32 0.0, %v795
    %v797 = vpop.f32.mrb[0].mxu0
    %v798 = vpop.f32.mrb[0].mxu0
    %v799 = vadd.f32 0.0, %v798
    %v800 = vpop.f32.mrb[0].mxu0
    %801 = vmatprep.mubr.bf16.mxu0 0
    %802 = vmatmul.mubr.bf16.gmra.mrb[0].mxu0 %v710
    %v803 = vpop.f32.mrb[0].mxu0
    %v804 = vadd.f32 0.0, %v803
    %v805 = vpop.f32.mrb[0].mxu0
    %v806 = vpop.f32.mrb[0].mxu0
    %v807 = vadd.f32 0.0, %v806
    %v808 = vpop.f32.mrb[0].mxu0
    %809 = vdwg.mxu0
    %v810 = vadd.f32 %v667, %v796
    %v811 = vadd.f32 %v668, %v799
    %v812 = vadd.f32 %v669, %v804
    %v813 = vadd.f32 %v670, %v807
    %vm814 = vsmask.f32 1280
    %vm815 = vsmask.f32 5392
    %vm816 = vmor %vm814, %vm815
    %v817 = vrot.slane %v89, 6
    %v818 = vrot.slane %v92, 7
    %v819 = vor.u32 %v817, %v818
    %v820 = vrot.slane %v819, 4
    %v821 = vrot.slane %v102, 6
    %v822 = vrot.slane %v98, 7
    %v823 = vor.u32 %v821, %v822
    %v824 = vsel %vm816, %v820, %v823
    %v825 = vrot.slane %v823, 4
    %v826 = vrot.slane %v524, 6
    %v827 = vrot.slane %v108, 7
    %v828 = vor.u32 %v826, %v827
    %v829 = vsel %vm816, %v825, %v828
    %v830 = vrot.slane %v113, 6
    %v831 = vrot.slane %v116, 7
    %v832 = vor.u32 %v830, %v831
    %v833 = vrot.slane %v832, 4
    %v834 = vrot.slane %v126, 6
    %v835 = vrot.slane %v122, 7
    %v836 = vor.u32 %v834, %v835
    %v837 = vsel %vm816, %v833, %v836
    %v838 = vrot.slane %v836, 4
    %v839 = vrot.slane %v539, 6
    %v840 = vrot.slane %v132, 7
    %v841 = vor.u32 %v839, %v840
    %v842 = vsel %vm816, %v838, %v841
    %s843 = scalar_lea.vmem [#allocation3], 320
    %v844 = vld [vmem:[%s843] sm:$0xf]
    %v845 = vld [vmem:[%s843 + $0x4] sm:$0xf]
    %v846 = vld [vmem:[%s843 + $0x8] sm:$0xf]
    %v847 = vld [vmem:[%s843 + $0xc] sm:$0xf]
    %v848 = vld [vmem:[%s843 + $0x10] sm:$0xf]
    %v849 = vld [vmem:[%s843 + $0x14] sm:$0xf]
    %v850 = vld [vmem:[%s843 + $0x18] sm:$0xf]
    %v851 = vld [vmem:[%s843 + $0x1c] sm:$0xf]
    %v852 = vld [vmem:[%s843 + $0x20] sm:$0xf]
    %v853 = vld [vmem:[%s843 + $0x24] sm:$0xf]
    %v854 = vld [vmem:[%s843 + $0x28] sm:$0xf]
    %v855 = vld [vmem:[%s843 + $0x2c] sm:$0xf]
    %v856 = vld [vmem:[%s843 + $0x30] sm:$0xf]
    %v857 = vld [vmem:[%s843 + $0x34] sm:$0xf]
    %v858 = vld [vmem:[%s843 + $0x38] sm:$0xf]
    %v859 = vld [vmem:[%s843 + $0x3c] sm:$0xf]
    %v860 = vunpack.c.l.b16 %v824
    %v861 = vunpack.c.l.b16 %v829
    %v862 = vunpack.c.l.b16 %v837
    %v863 = vunpack.c.l.b16 %v842
    %v864 = vpack.c.b16 %v861, %v860
    %v865 = vpack.c.b16 %v863, %v862
    %v884 = vunpack.c.l.b16 %v844
    %v885 = vunpack.c.l.b16 %v845
    %v886 = vunpack.c.l.b16 %v846
    %v887 = vunpack.c.l.b16 %v847
    %v888 = vunpack.c.l.b16 %v848
    %v889 = vunpack.c.l.b16 %v849
    %v890 = vunpack.c.l.b16 %v850
    %v891 = vunpack.c.l.b16 %v851
    %v892 = vunpack.c.l.b16 %v852
    %v893 = vunpack.c.l.b16 %v853
    %v894 = vunpack.c.l.b16 %v854
    %v895 = vunpack.c.l.b16 %v855
    %v896 = vunpack.c.l.b16 %v856
    %v897 = vunpack.c.l.b16 %v857
    %v898 = vunpack.c.l.b16 %v858
    %v899 = vunpack.c.l.b16 %v859
    %v900 = vpack.c.b16 %v885, %v884
    %v901 = vpack.c.b16 %v887, %v886
    %v902 = vpack.c.b16 %v889, %v888
    %v903 = vpack.c.b16 %v891, %v890
    %v904 = vpack.c.b16 %v893, %v892
    %v905 = vpack.c.b16 %v895, %v894
    %v906 = vpack.c.b16 %v897, %v896
    %v907 = vpack.c.b16 %v899, %v898
    %916 = vmatprep.subr.bf16.mxu0 0
    %917 = vmatpush1.bf16.msra.mxu0 %v900
    %918 = vmatprep.subr.bf16.mxu0 0
    %919 = vmatpush1.bf16.msra.mxu0 %v901
    %920 = vmatprep.subr.bf16.mxu0 0
    %921 = vmatpush1.bf16.msra.mxu0 %v902
    %922 = vmatprep.subr.bf16.mxu0 0
    %923 = vmatpush1.bf16.msra.mxu0 %v903
    %924 = vmatprep.subr.bf16.mxu0 0
    %925 = vmatpush1.bf16.msra.mxu0 %v904
    %926 = vmatprep.subr.bf16.mxu0 0
    %927 = vmatpush1.bf16.msra.mxu0 %v905
    %928 = vmatprep.subr.bf16.mxu0 0
    %929 = vmatpush1.bf16.msra.mxu0 %v906
    %930 = vmatprep.subr.bf16.mxu0 0
    %931 = vmatpush1.bf16.msra.mxu0 %v907
    %932 = vmatprep.subr.bf16.mxu0 0
    %933 = vmatpush1.bf16.msra.mxu0 0
    %934 = vmatprep.subr.bf16.mxu0 0
    %935 = vmatpush1.bf16.msra.mxu0 0
    %936 = vmatprep.subr.bf16.mxu0 0
    %937 = vmatpush1.bf16.msra.mxu0 0
    %938 = vmatprep.subr.bf16.mxu0 0
    %939 = vmatpush1.bf16.msra.mxu0 0
    %940 = vmatprep.subr.bf16.mxu0 0
    %941 = vmatpush1.bf16.msra.mxu0 0
    %942 = vmatprep.subr.bf16.mxu0 0
    %943 = vmatpush1.bf16.msra.mxu0 0
    %944 = vmatprep.subr.bf16.mxu0 0
    %945 = vmatpush1.bf16.msra.mxu0 0
    %946 = vmatprep.subr.bf16.mxu0 0
    %947 = vmatpush1.bf16.msra.mxu0 0
    %948 = vmatprep.mubr.bf16.mxu0 0
    %949 = vmatmul.mubr.bf16.gmra.mrb[0].mxu0 %v864
    %v950 = vpop.f32.mrb[0].mxu0
    %v951 = vadd.f32 0.0, %v950
    %v952 = vpop.f32.mrb[0].mxu0
    %v953 = vpop.f32.mrb[0].mxu0
    %v954 = vadd.f32 0.0, %v953
    %v955 = vpop.f32.mrb[0].mxu0
    %956 = vmatprep.mubr.bf16.mxu0 0
    %957 = vmatmul.mubr.bf16.gmra.mrb[0].mxu0 %v865
    %v958 = vpop.f32.mrb[0].mxu0
    %v959 = vadd.f32 0.0, %v958
    %v960 = vpop.f32.mrb[0].mxu0
    %v961 = vpop.f32.mrb[0].mxu0
    %v962 = vadd.f32 0.0, %v961
    %v963 = vpop.f32.mrb[0].mxu0
    %964 = vdwg.mxu0
    %v965 = vadd.f32 %v810, %v951
    %v966 = vadd.f32 %v811, %v954
    %v967 = vadd.f32 %v812, %v959
    %v968 = vadd.f32 %v813, %v962
    %vm969 = vcmask 1040384
    %vm970 = vcmask 1044484
    %vm971 = vmor %vm969, %vm970
    %v972 = vrot.slane %v63, 7
    %v973 = vrot.slane %v972, 4
    %v974 = vrot.slane %v64, 7
    %v975 = vsel %vm971, %v973, %v974
    %v976 = vrot.slane %v974, 4
    %v977 = vrot.slane %v65, 7
    %v978 = vsel %vm971, %v976, %v977
    %v979 = vrot.slane %v66, 7
    %v980 = vrot.slane %v979, 4
    %v981 = vrot.slane %v67, 7
    %v982 = vsel %vm971, %v980, %v981
    %v983 = vrot.slane %v981, 4
    %v984 = vrot.slane %v68, 7
    %v985 = vsel %vm971, %v983, %v984
    %s986 = scalar_lea.vmem [#allocation3], 384
    %v987 = vld [vmem:[%s986] sm:$0xf]
    %v988 = vld [vmem:[%s986 + $0x4] sm:$0xf]
    %v989 = vld [vmem:[%s986 + $0x8] sm:$0xf]
    %v990 = vld [vmem:[%s986 + $0xc] sm:$0xf]
    %v991 = vld [vmem:[%s986 + $0x10] sm:$0xf]
    %v992 = vld [vmem:[%s986 + $0x14] sm:$0xf]
    %v993 = vld [vmem:[%s986 + $0x18] sm:$0xf]
    %v994 = vld [vmem:[%s986 + $0x1c] sm:$0xf]
    %v995 = vld [vmem:[%s986 + $0x20] sm:$0xf]
    %v996 = vld [vmem:[%s986 + $0x24] sm:$0xf]
    %v997 = vld [vmem:[%s986 + $0x28] sm:$0xf]
    %v998 = vld [vmem:[%s986 + $0x2c] sm:$0xf]
    %v999 = vld [vmem:[%s986 + $0x30] sm:$0xf]
    %v1000 = vld [vmem:[%s986 + $0x34] sm:$0xf]
    %v1001 = vld [vmem:[%s986 + $0x38] sm:$0xf]
    %v1002 = vld [vmem:[%s986 + $0x3c] sm:$0xf]
    %v1003 = vunpack.c.l.b16 %v975
    %v1004 = vunpack.c.l.b16 %v978
    %v1005 = vunpack.c.l.b16 %v982
    %v1006 = vunpack.c.l.b16 %v985
    %v1007 = vpack.c.b16 %v1004, %v1003
    %v1008 = vpack.c.b16 %v1006, %v1005
    %v1027 = vunpack.c.l.b16 %v987
    %v1028 = vunpack.c.l.b16 %v988
    %v1029 = vunpack.c.l.b16 %v989
    %v1030 = vunpack.c.l.b16 %v990
    %v1031 = vunpack.c.l.b16 %v991
    %v1032 = vunpack.c.l.b16 %v992
    %v1033 = vunpack.c.l.b16 %v993
    %v1034 = vunpack.c.l.b16 %v994
    %v1035 = vunpack.c.l.b16 %v995
    %v1036 = vunpack.c.l.b16 %v996
    %v1037 = vunpack.c.l.b16 %v997
    %v1038 = vunpack.c.l.b16 %v998
    %v1039 = vunpack.c.l.b16 %v999
    %v1040 = vunpack.c.l.b16 %v1000
    %v1041 = vunpack.c.l.b16 %v1001
    %v1042 = vunpack.c.l.b16 %v1002
    %v1043 = vpack.c.b16 %v1028, %v1027
    %v1044 = vpack.c.b16 %v1030, %v1029
    %v1045 = vpack.c.b16 %v1032, %v1031
    %v1046 = vpack.c.b16 %v1034, %v1033
    %v1047 = vpack.c.b16 %v1036, %v1035
    %v1048 = vpack.c.b16 %v1038, %v1037
    %v1049 = vpack.c.b16 %v1040, %v1039
    %v1050 = vpack.c.b16 %v1042, %v1041
    %1059 = vmatprep.subr.bf16.mxu0 0
    %1060 = vmatpush1.bf16.msra.mxu0 %v1043
    %1061 = vmatprep.subr.bf16.mxu0 0
    %1062 = vmatpush1.bf16.msra.mxu0 %v1044
    %1063 = vmatprep.subr.bf16.mxu0 0
    %1064 = vmatpush1.bf16.msra.mxu0 %v1045
    %1065 = vmatprep.subr.bf16.mxu0 0
    %1066 = vmatpush1.bf16.msra.mxu0 %v1046
    %1067 = vmatprep.subr.bf16.mxu0 0
    %1068 = vmatpush1.bf16.msra.mxu0 %v1047
    %1069 = vmatprep.subr.bf16.mxu0 0
    %1070 = vmatpush1.bf16.msra.mxu0 %v1048
    %1071 = vmatprep.subr.bf16.mxu0 0
    %1072 = vmatpush1.bf16.msra.mxu0 %v1049
    %1073 = vmatprep.subr.bf16.mxu0 0
    %1074 = vmatpush1.bf16.msra.mxu0 %v1050
    %1075 = vmatprep.subr.bf16.mxu0 0
    %1076 = vmatpush1.bf16.msra.mxu0 0
    %1077 = vmatprep.subr.bf16.mxu0 0
    %1078 = vmatpush1.bf16.msra.mxu0 0
    %1079 = vmatprep.subr.bf16.mxu0 0
    %1080 = vmatpush1.bf16.msra.mxu0 0
    %1081 = vmatprep.subr.bf16.mxu0 0
    %1082 = vmatpush1.bf16.msra.mxu0 0
    %1083 = vmatprep.subr.bf16.mxu0 0
    %1084 = vmatpush1.bf16.msra.mxu0 0
    %1085 = vmatprep.subr.bf16.mxu0 0
    %1086 = vmatpush1.bf16.msra.mxu0 0
    %1087 = vmatprep.subr.bf16.mxu0 0
    %1088 = vmatpush1.bf16.msra.mxu0 0
    %1089 = vmatprep.subr.bf16.mxu0 0
    %1090 = vmatpush1.bf16.msra.mxu0 0
    %1091 = vmatprep.mubr.bf16.mxu0 0
    %1092 = vmatmul.mubr.bf16.gmra.mrb[0].mxu0 %v1007
    %v1093 = vpop.f32.mrb[0].mxu0
    %v1094 = vadd.f32 0.0, %v1093
    %v1095 = vpop.f32.mrb[0].mxu0
    %v1096 = vpop.f32.mrb[0].mxu0
    %v1097 = vadd.f32 0.0, %v1096
    %v1098 = vpop.f32.mrb[0].mxu0
    %1099 = vmatprep.mubr.bf16.mxu0 0
    %1100 = vmatmul.mubr.bf16.gmra.mrb[0].mxu0 %v1008
    %v1101 = vpop.f32.mrb[0].mxu0
    %v1102 = vadd.f32 0.0, %v1101
    %v1103 = vpop.f32.mrb[0].mxu0
    %v1104 = vpop.f32.mrb[0].mxu0
    %v1105 = vadd.f32 0.0, %v1104
    %v1106 = vpop.f32.mrb[0].mxu0
    %1107 = vdwg.mxu0
    %v1108 = vadd.f32 %v965, %v1094
    %v1109 = vadd.f32 %v966, %v1097
    %v1110 = vadd.f32 %v967, %v1102
    %v1111 = vadd.f32 %v968, %v1105
    %vm1112 = vsmask.f32 256
    %vm1113 = vsmask.f32 4368
    %vm1114 = vmor %vm1112, %vm1113
    %v1115 = vrot.slane %v89, 7
    %v1116 = vrot.slane %v1115, 4
    %v1117 = vrot.slane %v102, 7
    %v1118 = vor.u32 %v1117, %v98
    %v1119 = vsel %vm1114, %v1116, %v1118
    %v1120 = vrot.slane %v1117, 4
    %v1121 = vrot.slane %v524, 7
    %v1122 = vor.u32 %v1121, %v108
    %v1123 = vsel %vm1114, %v1120, %v1122
    %v1124 = vrot.slane %v113, 7
    %v1125 = vrot.slane %v1124, 4
    %v1126 = vrot.slane %v126, 7
    %v1127 = vor.u32 %v1126, %v122
    %v1128 = vsel %vm1114, %v1125, %v1127
    %v1129 = vrot.slane %v1126, 4
    %v1130 = vrot.slane %v539, 7
    %v1131 = vor.u32 %v1130, %v132
    %v1132 = vsel %vm1114, %v1129, %v1131
    %s1133 = scalar_lea.vmem [#allocation3], 448
    %v1134 = vld [vmem:[%s1133] sm:$0xf]
    %v1135 = vld [vmem:[%s1133 + $0x4] sm:$0xf]
    %v1136 = vld [vmem:[%s1133 + $0x8] sm:$0xf]
    %v1137 = vld [vmem:[%s1133 + $0xc] sm:$0xf]
    %v1138 = vld [vmem:[%s1133 + $0x10] sm:$0xf]
    %v1139 = vld [vmem:[%s1133 + $0x14] sm:$0xf]
    %v1140 = vld [vmem:[%s1133 + $0x18] sm:$0xf]
    %v1141 = vld [vmem:[%s1133 + $0x1c] sm:$0xf]
    %v1142 = vld [vmem:[%s1133 + $0x20] sm:$0xf]
    %v1143 = vld [vmem:[%s1133 + $0x24] sm:$0xf]
    %v1144 = vld [vmem:[%s1133 + $0x28] sm:$0xf]
    %v1145 = vld [vmem:[%s1133 + $0x2c] sm:$0xf]
    %v1146 = vld [vmem:[%s1133 + $0x30] sm:$0xf]
    %v1147 = vld [vmem:[%s1133 + $0x34] sm:$0xf]
    %v1148 = vld [vmem:[%s1133 + $0x38] sm:$0xf]
    %v1149 = vld [vmem:[%s1133 + $0x3c] sm:$0xf]
    %v1150 = vunpack.c.l.b16 %v1119
    %v1151 = vunpack.c.l.b16 %v1123
    %v1152 = vunpack.c.l.b16 %v1128
    %v1153 = vunpack.c.l.b16 %v1132
    %v1154 = vpack.c.b16 %v1151, %v1150
    %v1155 = vpack.c.b16 %v1153, %v1152
    %v1174 = vunpack.c.l.b16 %v1134
    %v1175 = vunpack.c.l.b16 %v1135
    %v1176 = vunpack.c.l.b16 %v1136
    %v1177 = vunpack.c.l.b16 %v1137
    %v1178 = vunpack.c.l.b16 %v1138
    %v1179 = vunpack.c.l.b16 %v1139
    %v1180 = vunpack.c.l.b16 %v1140
    %v1181 = vunpack.c.l.b16 %v1141
    %v1182 = vunpack.c.l.b16 %v1142
    %v1183 = vunpack.c.l.b16 %v1143
    %v1184 = vunpack.c.l.b16 %v1144
    %v1185 = vunpack.c.l.b16 %v1145
    %v1186 = vunpack.c.l.b16 %v1146
    %v1187 = vunpack.c.l.b16 %v1147
    %v1188 = vunpack.c.l.b16 %v1148
    %v1189 = vunpack.c.l.b16 %v1149
    %v1190 = vpack.c.b16 %v1175, %v1174
    %v1191 = vpack.c.b16 %v1177, %v1176
    %v1192 = vpack.c.b16 %v1179, %v1178
    %v1193 = vpack.c.b16 %v1181, %v1180
    %v1194 = vpack.c.b16 %v1183, %v1182
    %v1195 = vpack.c.b16 %v1185, %v1184
    %v1196 = vpack.c.b16 %v1187, %v1186
    %v1197 = vpack.c.b16 %v1189, %v1188
    %1206 = vmatprep.subr.bf16.mxu0 0
    %1207 = vmatpush1.bf16.msra.mxu0 %v1190
    %1208 = vmatprep.subr.bf16.mxu0 0
    %1209 = vmatpush1.bf16.msra.mxu0 %v1191
    %1210 = vmatprep.subr.bf16.mxu0 0
    %1211 = vmatpush1.bf16.msra.mxu0 %v1192
    %1212 = vmatprep.subr.bf16.mxu0 0
    %1213 = vmatpush1.bf16.msra.mxu0 %v1193
    %1214 = vmatprep.subr.bf16.mxu0 0
    %1215 = vmatpush1.bf16.msra.mxu0 %v1194
    %1216 = vmatprep.subr.bf16.mxu0 0
    %1217 = vmatpush1.bf16.msra.mxu0 %v1195
    %1218 = vmatprep.subr.bf16.mxu0 0
    %1219 = vmatpush1.bf16.msra.mxu0 %v1196
    %1220 = vmatprep.subr.bf16.mxu0 0
    %1221 = vmatpush1.bf16.msra.mxu0 %v1197
    %1222 = vmatprep.subr.bf16.mxu0 0
    %1223 = vmatpush1.bf16.msra.mxu0 0
    %1224 = vmatprep.subr.bf16.mxu0 0
    %1225 = vmatpush1.bf16.msra.mxu0 0
    %1226 = vmatprep.subr.bf16.mxu0 0
    %1227 = vmatpush1.bf16.msra.mxu0 0
    %1228 = vmatprep.subr.bf16.mxu0 0
    %1229 = vmatpush1.bf16.msra.mxu0 0
    %1230 = vmatprep.subr.bf16.mxu0 0
    %1231 = vmatpush1.bf16.msra.mxu0 0
    %1232 = vmatprep.subr.bf16.mxu0 0
    %1233 = vmatpush1.bf16.msra.mxu0 0
    %1234 = vmatprep.subr.bf16.mxu0 0
    %1235 = vmatpush1.bf16.msra.mxu0 0
    %1236 = vmatprep.subr.bf16.mxu0 0
    %1237 = vmatpush1.bf16.msra.mxu0 0
    %1238 = vmatprep.mubr.bf16.mxu0 0
    %1239 = vmatmul.mubr.bf16.gmra.mrb[0].mxu0 %v1154
    %v1240 = vpop.f32.mrb[0].mxu0
    %v1241 = vadd.f32 0.0, %v1240
    %v1242 = vpop.f32.mrb[0].mxu0
    %v1243 = vpop.f32.mrb[0].mxu0
    %v1244 = vadd.f32 0.0, %v1243
    %v1245 = vpop.f32.mrb[0].mxu0
    %1246 = vmatprep.mubr.bf16.mxu0 0
    %1247 = vmatmul.mubr.bf16.gmra.mrb[0].mxu0 %v1155
    %v1248 = vpop.f32.mrb[0].mxu0
    %v1249 = vadd.f32 0.0, %v1248
    %v1250 = vpop.f32.mrb[0].mxu0
    %v1251 = vpop.f32.mrb[0].mxu0
    %v1252 = vadd.f32 0.0, %v1251
    %v1253 = vpop.f32.mrb[0].mxu0
    %1254 = vdwg.mxu0
    %v1255 = vadd.f32 %v1108, %v1241
    %v1256 = vadd.f32 %v1109, %v1244
    %v1257 = vadd.f32 %v1110, %v1249
    %v1258 = vadd.f32 %v1111, %v1252
    %s1259 = scalar_lea.vmem [#allocation3], 512
    %v1260 = vld [vmem:[%s1259] sm:$0xf]
    %v1261 = vld [vmem:[%s1259 + $0x4] sm:$0xf]
    %v1262 = vld [vmem:[%s1259 + $0x8] sm:$0xf]
    %v1263 = vld [vmem:[%s1259 + $0xc] sm:$0xf]
    %v1264 = vld [vmem:[%s1259 + $0x10] sm:$0xf]
    %v1265 = vld [vmem:[%s1259 + $0x14] sm:$0xf]
    %v1266 = vld [vmem:[%s1259 + $0x18] sm:$0xf]
    %v1267 = vld [vmem:[%s1259 + $0x1c] sm:$0xf]
    %v1268 = vld [vmem:[%s1259 + $0x20] sm:$0xf]
    %v1269 = vld [vmem:[%s1259 + $0x24] sm:$0xf]
    %v1270 = vld [vmem:[%s1259 + $0x28] sm:$0xf]
    %v1271 = vld [vmem:[%s1259 + $0x2c] sm:$0xf]
    %v1272 = vld [vmem:[%s1259 + $0x30] sm:$0xf]
    %v1273 = vld [vmem:[%s1259 + $0x34] sm:$0xf]
    %v1274 = vld [vmem:[%s1259 + $0x38] sm:$0xf]
    %v1275 = vld [vmem:[%s1259 + $0x3c] sm:$0xf]
    %v1276 = vunpack.c.l.b16 %v65
    %v1277 = vunpack.c.l.b16 %v68
    %v1278 = vpack.c.b16 %v1276, %v263
    %v1279 = vpack.c.b16 %v1277, %v265
    %v1298 = vunpack.c.l.b16 %v1260
    %v1299 = vunpack.c.l.b16 %v1261
    %v1300 = vunpack.c.l.b16 %v1262
    %v1301 = vunpack.c.l.b16 %v1263
    %v1302 = vunpack.c.l.b16 %v1264
    %v1303 = vunpack.c.l.b16 %v1265
    %v1304 = vunpack.c.l.b16 %v1266
    %v1305 = vunpack.c.l.b16 %v1267
    %v1306 = vunpack.c.l.b16 %v1268
    %v1307 = vunpack.c.l.b16 %v1269
    %v1308 = vunpack.c.l.b16 %v1270
    %v1309 = vunpack.c.l.b16 %v1271
    %v1310 = vunpack.c.l.b16 %v1272
    %v1311 = vunpack.c.l.b16 %v1273
    %v1312 = vunpack.c.l.b16 %v1274
    %v1313 = vunpack.c.l.b16 %v1275
    %v1314 = vpack.c.b16 %v1299, %v1298
    %v1315 = vpack.c.b16 %v1301, %v1300
    %v1316 = vpack.c.b16 %v1303, %v1302
    %v1317 = vpack.c.b16 %v1305, %v1304
    %v1318 = vpack.c.b16 %v1307, %v1306
    %v1319 = vpack.c.b16 %v1309, %v1308
    %v1320 = vpack.c.b16 %v1311, %v1310
    %v1321 = vpack.c.b16 %v1313, %v1312
    %1330 = vmatprep.subr.bf16.mxu0 0
    %1331 = vmatpush1.bf16.msra.mxu0 %v1314
    %1332 = vmatprep.subr.bf16.mxu0 0
    %1333 = vmatpush1.bf16.msra.mxu0 %v1315
    %1334 = vmatprep.subr.bf16.mxu0 0
    %1335 = vmatpush1.bf16.msra.mxu0 %v1316
    %1336 = vmatprep.subr.bf16.mxu0 0
    %1337 = vmatpush1.bf16.msra.mxu0 %v1317
    %1338 = vmatprep.subr.bf16.mxu0 0
    %1339 = vmatpush1.bf16.msra.mxu0 %v1318
    %1340 = vmatprep.subr.bf16.mxu0 0
    %1341 = vmatpush1.bf16.msra.mxu0 %v1319
    %1342 = vmatprep.subr.bf16.mxu0 0
    %1343 = vmatpush1.bf16.msra.mxu0 %v1320
    %1344 = vmatprep.subr.bf16.mxu0 0
    %1345 = vmatpush1.bf16.msra.mxu0 %v1321
    %1346 = vmatprep.subr.bf16.mxu0 0
    %1347 = vmatpush1.bf16.msra.mxu0 0
    %1348 = vmatprep.subr.bf16.mxu0 0
    %1349 = vmatpush1.bf16.msra.mxu0 0
    %1350 = vmatprep.subr.bf16.mxu0 0
    %1351 = vmatpush1.bf16.msra.mxu0 0
    %1352 = vmatprep.subr.bf16.mxu0 0
    %1353 = vmatpush1.bf16.msra.mxu0 0
    %1354 = vmatprep.subr.bf16.mxu0 0
    %1355 = vmatpush1.bf16.msra.mxu0 0
    %1356 = vmatprep.subr.bf16.mxu0 0
    %1357 = vmatpush1.bf16.msra.mxu0 0
    %1358 = vmatprep.subr.bf16.mxu0 0
    %1359 = vmatpush1.bf16.msra.mxu0 0
    %1360 = vmatprep.subr.bf16.mxu0 0
    %1361 = vmatpush1.bf16.msra.mxu0 0
    %1362 = vmatprep.mubr.bf16.mxu0 0
    %1363 = vmatmul.mubr.bf16.gmra.mrb[0].mxu0 %v1278
    %v1364 = vpop.f32.mrb[0].mxu0
    %v1365 = vadd.f32 0.0, %v1364
    %v1366 = vpop.f32.mrb[0].mxu0
    %v1367 = vpop.f32.mrb[0].mxu0
    %v1368 = vadd.f32 0.0, %v1367
    %v1369 = vpop.f32.mrb[0].mxu0
    %1370 = vmatprep.mubr.bf16.mxu0 0
    %1371 = vmatmul.mubr.bf16.gmra.mrb[0].mxu0 %v1279
    %v1372 = vpop.f32.mrb[0].mxu0
    %v1373 = vadd.f32 0.0, %v1372
    %v1374 = vpop.f32.mrb[0].mxu0
    %v1375 = vpop.f32.mrb[0].mxu0
    %v1376 = vadd.f32 0.0, %v1375
    %v1377 = vpop.f32.mrb[0].mxu0
    %1378 = vdwg.mxu0
    %v1379 = vadd.f32 %v1255, %v1365
    %v1380 = vadd.f32 %v1256, %v1368
    %v1381 = vadd.f32 %v1257, %v1373
    %v1382 = vadd.f32 %v1258, %v1376
    %v1383 = vld [vmem:[%s2] sm:$0x1]
    %v1385 = vlaneseq
    %v1386 = vshrl.u32 %v1385, 7
    %v1387 = vsub.s32 0, %v1386
    %v1388 = vrot.slane %v1383, %v1387
    %v1390 = vmul.f32 %v1379, %v1388
    %v1391 = vmul.f32 %v1380, %v1388
    %v1392 = vmul.f32 %v1381, %v1388
    %v1393 = vmul.f32 %v1382, %v1388
    %v1394 = vld [vmem:[%s3] sm:$0x1]
    %v1396 = vlaneseq
    %v1397 = vshrl.u32 %v1396, 7
    %v1398 = vsub.s32 0, %v1397
    %v1399 = vrot.slane %v1394, %v1398
    %v1401 = vadd.f32 %v1390, %v1399
    %v1402 = vadd.f32 %v1391, %v1399
    %v1403 = vadd.f32 %v1392, %v1399
    %v1404 = vadd.f32 %v1393, %v1399
    %v1405 = vmax.f32 %v1401, 0.0
    %v1406 = vmax.f32 %v1402, 0.0
    %v1407 = vmax.f32 %v1403, 0.0
    %v1408 = vmax.f32 %v1404, 0.0
    %vm1409 = vcmp.ne.f32.partialorder %v1401, %v1401
    %vm1410 = vcmp.ne.f32.partialorder %v1402, %v1402
    %vm1411 = vcmp.ne.f32.partialorder %v1403, %v1403
    %vm1412 = vcmp.ne.f32.partialorder %v1404, %v1404
    %v1413 = vadd.f32 %v1401, 0.0
    %v1414 = vadd.f32 %v1402, 0.0
    %v1415 = vadd.f32 %v1403, 0.0
    %v1416 = vadd.f32 %v1404, 0.0
    %v1417 = vand.u32 2147483647, %v1401
    %v1418 = vand.u32 2147483647, %v1402
    %v1419 = vand.u32 2147483647, %v1403
    %v1420 = vand.u32 2147483647, %v1404
    %v1421 = vsub.f32 0.0, %v1417
    %v1422 = vsub.f32 0.0, %v1418
    %v1423 = vsub.f32 0.0, %v1419
    %v1424 = vsub.f32 0.0, %v1420
    %v1425 = vmul.f32 %v1421, 1.442695
    %v1426 = vpow.pop %v1425
    %v1427 = vmul.f32 %v1422, 1.442695
    %v1428 = vpow.pop %v1427
    %v1429 = vmul.f32 %v1423, 1.442695
    %v1430 = vpow.pop %v1429
    %v1431 = vmul.f32 %v1424, 1.442695
    %v1432 = vpow.pop %v1431
    %v1433 = vadd.f32 %v1426, 1.0
    %v1434 = vlog2.pop %v1433
    %v1435 = vmul.f32 %v1434, 0.6931472
    %v1436 = vmul.f32 -0.5, %v1426
    %v1437 = vadd.f32 %v1436, 1.0
    %v1438 = vmul.f32 %v1437, %v1426
    %v1439 = vand.u32 2147483647, %v1426
    %vm1440 = vcmp.lt.f32.partialorder %v1439, 0.0004427343
    %v1441 = vsel %vm1440, %v1438, %v1435
    %v1442 = vadd.f32 %v1428, 1.0
    %v1443 = vlog2.pop %v1442
    %v1444 = vmul.f32 %v1443, 0.6931472
    %v1445 = vmul.f32 -0.5, %v1428
    %v1446 = vadd.f32 %v1445, 1.0
    %v1447 = vmul.f32 %v1446, %v1428
    %v1448 = vand.u32 2147483647, %v1428
    %vm1449 = vcmp.lt.f32.partialorder %v1448, 0.0004427343
    %v1450 = vsel %vm1449, %v1447, %v1444
    %v1451 = vadd.f32 %v1430, 1.0
    %v1452 = vlog2.pop %v1451
    %v1453 = vmul.f32 %v1452, 0.6931472
    %v1454 = vmul.f32 -0.5, %v1430
    %v1455 = vadd.f32 %v1454, 1.0
    %v1456 = vmul.f32 %v1455, %v1430
    %v1457 = vand.u32 2147483647, %v1430
    %vm1458 = vcmp.lt.f32.partialorder %v1457, 0.0004427343
    %v1459 = vsel %vm1458, %v1456, %v1453
    %v1460 = vadd.f32 %v1432, 1.0
    %v1461 = vlog2.pop %v1460
    %v1462 = vmul.f32 %v1461, 0.6931472
    %v1463 = vmul.f32 -0.5, %v1432
    %v1464 = vadd.f32 %v1463, 1.0
    %v1465 = vmul.f32 %v1464, %v1432
    %v1466 = vand.u32 2147483647, %v1432
    %vm1467 = vcmp.lt.f32.partialorder %v1466, 0.0004427343
    %v1468 = vsel %vm1467, %v1465, %v1462
    %v1469 = vadd.f32 %v1405, %v1441
    %v1470 = vadd.f32 %v1406, %v1450
    %v1471 = vadd.f32 %v1407, %v1459
    %v1472 = vadd.f32 %v1408, %v1468
    %v1473 = vsel %vm1409, %v1413, %v1469
    %v1474 = vsel %vm1410, %v1414, %v1470
    %v1475 = vsel %vm1411, %v1415, %v1471
    %v1476 = vsel %vm1412, %v1416, %v1472
    %v1477 = vtanh.pop %v1473
    %v1478 = vtanh.pop %v1474
    %v1479 = vtanh.pop %v1475
    %v1480 = vtanh.pop %v1476
    %v1481 = vmul.f32 %v1401, %v1477
    %v1482 = vmul.f32 %v1402, %v1478
    %v1483 = vmul.f32 %v1403, %v1479
    %v1484 = vmul.f32 %v1404, %v1480
    %v1485 = vld [vmem:[%s4] sm:$0xff]
    %v1486 = vld [vmem:[%s4 + $0x8] sm:$0xff]
    %v1487 = vld [vmem:[%s4 + $0x10] sm:$0xff]
    %v1488 = vld [vmem:[%s4 + $0x18] sm:$0xff]
    %v1489 = vld [vmem:[%s4 + $0x20] sm:$0xff]
    %v1490 = vld [vmem:[%s4 + $0x28] sm:$0xff]
    %v1491 = vld [vmem:[%s4 + $0x30] sm:$0xff]
    %v1492 = vld [vmem:[%s4 + $0x38] sm:$0xff]
    %v1493 = vld [vmem:[%s4 + $0x40] sm:$0xff]
    %v1494 = vld [vmem:[%s4 + $0x48] sm:$0xff]
    %v1495 = vld [vmem:[%s4 + $0x50] sm:$0xff]
    %v1496 = vld [vmem:[%s4 + $0x58] sm:$0xff]
    %v1497 = vld [vmem:[%s4 + $0x60] sm:$0xff]
    %v1498 = vld [vmem:[%s4 + $0x68] sm:$0xff]
    %v1499 = vld [vmem:[%s4 + $0x70] sm:$0xff]
    %v1500 = vld [vmem:[%s4 + $0x78] sm:$0xff]
    %1501 = vmatprep.subr.mxu0 0.0
    %1502 = vmatpush1.msra.mxu0 %v1485
    %1503 = vmatprep.subr.mxu0 0.0
    %1504 = vmatpush1.msra.mxu0 %v1486
    %1505 = vmatprep.subr.mxu0 0.0
    %1506 = vmatpush1.msra.mxu0 %v1487
    %1507 = vmatprep.subr.mxu0 0.0
    %1508 = vmatpush1.msra.mxu0 %v1488
    %1509 = vmatprep.subr.mxu0 0.0
    %1510 = vmatpush1.msra.mxu0 %v1489
    %1511 = vmatprep.subr.mxu0 0.0
    %1512 = vmatpush1.msra.mxu0 %v1490
    %1513 = vmatprep.subr.mxu0 0.0
    %1514 = vmatpush1.msra.mxu0 %v1491
    %1515 = vmatprep.subr.mxu0 0.0
    %1516 = vmatpush1.msra.mxu0 %v1492
    %1517 = vmatprep.subr.mxu0 0.0
    %1518 = vmatpush1.msra.mxu0 %v1493
    %1519 = vmatprep.subr.mxu0 0.0
    %1520 = vmatpush1.msra.mxu0 %v1494
    %1521 = vmatprep.subr.mxu0 0.0
    %1522 = vmatpush1.msra.mxu0 %v1495
    %1523 = vmatprep.subr.mxu0 0.0
    %1524 = vmatpush1.msra.mxu0 %v1496
    %1525 = vmatprep.subr.mxu0 0.0
    %1526 = vmatpush1.msra.mxu0 %v1497
    %1527 = vmatprep.subr.mxu0 0.0
    %1528 = vmatpush1.msra.mxu0 %v1498
    %1529 = vmatprep.subr.mxu0 0.0
    %1530 = vmatpush1.msra.mxu0 %v1499
    %1531 = vmatprep.subr.mxu0 0.0
    %1532 = vmatpush1.msra.mxu0 %v1500
    %1533 = vmatprep.subr.mxu0 0.0
    %1534 = vmatpush1.msra.mxu0 0.0
    %1535 = vmatprep.subr.mxu0 0.0
    %1536 = vmatpush1.msra.mxu0 0.0
    %1537 = vmatprep.subr.mxu0 0.0
    %1538 = vmatpush1.msra.mxu0 0.0
    %1539 = vmatprep.subr.mxu0 0.0
    %1540 = vmatpush1.msra.mxu0 0.0
    %1541 = vmatprep.subr.mxu0 0.0
    %1542 = vmatpush1.msra.mxu0 0.0
    %1543 = vmatprep.subr.mxu0 0.0
    %1544 = vmatpush1.msra.mxu0 0.0
    %1545 = vmatprep.subr.mxu0 0.0
    %1546 = vmatpush1.msra.mxu0 0.0
    %1547 = vmatprep.subr.mxu0 0.0
    %1548 = vmatpush1.msra.mxu0 0.0
    %1549 = vmatprep.subr.mxu0 0.0
    %1550 = vmatpush1.msra.mxu0 0.0
    %1551 = vmatprep.subr.mxu0 0.0
    %1552 = vmatpush1.msra.mxu0 0.0
    %1553 = vmatprep.subr.mxu0 0.0
    %1554 = vmatpush1.msra.mxu0 0.0
    %1555 = vmatprep.subr.mxu0 0.0
    %1556 = vmatpush1.msra.mxu0 0.0
    %1557 = vmatprep.subr.mxu0 0.0
    %1558 = vmatpush1.msra.mxu0 0.0
    %1559 = vmatprep.subr.mxu0 0.0
    %1560 = vmatpush1.msra.mxu0 0.0
    %1561 = vmatprep.subr.mxu0 0.0
    %1562 = vmatpush1.msra.mxu0 0.0
    %1563 = vmatprep.subr.mxu0 0.0
    %1564 = vmatpush1.msra.mxu0 0.0
    %1565 = vmatprep.mubr.f32.mxu0 0.0
    %1566 = vmatmul.mubr.f32.gmra.mrb[0].mxu0 %v1481
    %v1567 = vpop.f32.mrb[0].mxu0
    %v1568 = vadd.f32 0.0, %v1567
    %v1569 = vpop.f32.mrb[0].mxu0
    %1570 = vmatprep.mubr.f32.mxu0 0.0
    %1571 = vmatmul.mubr.f32.gmra.mrb[0].mxu0 %v1482
    %v1572 = vpop.f32.mrb[0].mxu0
    %v1573 = vadd.f32 0.0, %v1572
    %v1574 = vpop.f32.mrb[0].mxu0
    %1575 = vmatprep.mubr.f32.mxu0 0.0
    %1576 = vmatmul.mubr.f32.gmra.mrb[0].mxu0 %v1483
    %v1577 = vpop.f32.mrb[0].mxu0
    %v1578 = vadd.f32 0.0, %v1577
    %v1579 = vpop.f32.mrb[0].mxu0
    %1580 = vmatprep.mubr.f32.mxu0 0.0
    %1581 = vmatmul.mubr.f32.gmra.mrb[0].mxu0 %v1484
    %v1582 = vpop.f32.mrb[0].mxu0
    %v1583 = vadd.f32 0.0, %v1582
    %v1584 = vpop.f32.mrb[0].mxu0
    %1585 = vdwg.mxu0
    %vm1586 = vcmask 72704
    %1587 = vst.msk [vmem:[#allocation2 + $0x4] sm:$0xff] %vm1586, %v1568
    %1588 = vst.msk [vmem:[#allocation2 + $0xc] sm:$0xff] %vm1586, %v1573
    %1589 = vst.msk [vmem:[#allocation2 + $0x1c] sm:$0xff] %vm1586, %v1578
    %1590 = vst.msk [vmem:[#allocation2 + $0x24] sm:$0xff] %vm1586, %v1583
    %v1591 = vlaneseq
    %v1592 = vand.u32 %v1591, 127
    %vm1593 = vcmp.eq.s32.totalorder %v1592, 0
    %v1594 = vld [vmem:[#allocation2] sm:$0xff]
    %v1595 = vld [vmem:[#allocation2 + $0x8] sm:$0xff]
    %v1596 = vld [vmem:[#allocation2 + $0x18] sm:$0xff]
    %v1597 = vld [vmem:[#allocation2 + $0x20] sm:$0xff]
    %v1598 = vsel %vm1593, %v1594, 0.0
    %v1599 = vsel %vm1593, %v1595, 0.0
    %v1600 = vsel %vm1593, %v1596, 0.0
    %v1601 = vsel %vm1593, %v1597, 0.0
    %v1602 = vadd.f32 %v1598, 0.0
    %v1603 = vadd.f32 %v1599, 0.0
    %v1604 = vadd.f32 %v1600, 0.0
    %v1605 = vadd.f32 %v1601, 0.0
    %vm1606 = vcmp.eq.s32.totalorder %v1592, 1
    %v1607 = vld [vmem:[#allocation2 + $0x1] sm:$0xff]
    %v1608 = vld [vmem:[#allocation2 + $0x9] sm:$0xff]
    %v1609 = vld [vmem:[#allocation2 + $0x19] sm:$0xff]
    %v1610 = vld [vmem:[#allocation2 + $0x21] sm:$0xff]
    %v1611 = vsel %vm1606, %v1607, 0.0
    %v1612 = vsel %vm1606, %v1608, 0.0
    %v1613 = vsel %vm1606, %v1609, 0.0
    %v1614 = vsel %vm1606, %v1610, 0.0
    %v1615 = vadd.f32 %v1602, %v1611
    %v1616 = vadd.f32 %v1603, %v1612
    %v1617 = vadd.f32 %v1604, %v1613
    %v1618 = vadd.f32 %v1605, %v1614
    %vm1619 = vcmp.eq.s32.totalorder %v1592, 2
    %v1620 = vld [vmem:[#allocation2 + $0x2] sm:$0xff]
    %v1621 = vld [vmem:[#allocation2 + $0xa] sm:$0xff]
    %v1622 = vld [vmem:[#allocation2 + $0x1a] sm:$0xff]
    %v1623 = vld [vmem:[#allocation2 + $0x22] sm:$0xff]
    %v1624 = vsel %vm1619, %v1620, 0.0
    %v1625 = vsel %vm1619, %v1621, 0.0
    %v1626 = vsel %vm1619, %v1622, 0.0
    %v1627 = vsel %vm1619, %v1623, 0.0
    %v1628 = vadd.f32 %v1615, %v1624
    %v1629 = vadd.f32 %v1616, %v1625
    %v1630 = vadd.f32 %v1617, %v1626
    %v1631 = vadd.f32 %v1618, %v1627
    %vm1632 = vcmp.eq.s32.totalorder %v1592, 3
    %v1633 = vld [vmem:[#allocation2 + $0x3] sm:$0xff]
    %v1634 = vld [vmem:[#allocation2 + $0xb] sm:$0xff]
    %v1635 = vld [vmem:[#allocation2 + $0x1b] sm:$0xff]
    %v1636 = vld [vmem:[#allocation2 + $0x23] sm:$0xff]
    %v1637 = vsel %vm1632, %v1633, 0.0
    %v1638 = vsel %vm1632, %v1634, 0.0
    %v1639 = vsel %vm1632, %v1635, 0.0
    %v1640 = vsel %vm1632, %v1636, 0.0
    %v1641 = vadd.f32 %v1628, %v1637
    %v1642 = vadd.f32 %v1629, %v1638
    %v1643 = vadd.f32 %v1630, %v1639
    %v1644 = vadd.f32 %v1631, %v1640
    %vm1645 = vcmp.eq.s32.totalorder %v1592, 4
    %v1646 = vld [vmem:[#allocation2 + $0x4] sm:$0xff]
    %v1647 = vld [vmem:[#allocation2 + $0xc] sm:$0xff]
    %v1648 = vld [vmem:[#allocation2 + $0x1c] sm:$0xff]
    %v1649 = vld [vmem:[#allocation2 + $0x24] sm:$0xff]
    %v1650 = vsel %vm1645, %v1646, 0.0
    %v1651 = vsel %vm1645, %v1647, 0.0
    %v1652 = vsel %vm1645, %v1648, 0.0
    %v1653 = vsel %vm1645, %v1649, 0.0
    %v1654 = vadd.f32 %v1641, %v1650
    %v1655 = vadd.f32 %v1642, %v1651
    %v1656 = vadd.f32 %v1643, %v1652
    %v1657 = vadd.f32 %v1644, %v1653
    %vm1658 = vcmp.eq.s32.totalorder %v1592, 5
    %v1659 = vld [vmem:[#allocation2 + $0x5] sm:$0xff]
    %v1660 = vld [vmem:[#allocation2 + $0xd] sm:$0xff]
    %v1661 = vld [vmem:[#allocation2 + $0x1d] sm:$0xff]
    %v1662 = vld [vmem:[#allocation2 + $0x25] sm:$0xff]
    %v1663 = vsel %vm1658, %v1659, 0.0
    %v1664 = vsel %vm1658, %v1660, 0.0
    %v1665 = vsel %vm1658, %v1661, 0.0
    %v1666 = vsel %vm1658, %v1662, 0.0
    %v1667 = vadd.f32 %v1654, %v1663
    %v1668 = vadd.f32 %v1655, %v1664
    %v1669 = vadd.f32 %v1656, %v1665
    %v1670 = vadd.f32 %v1657, %v1666
    %vm1671 = vcmp.eq.s32.totalorder %v1592, 6
    %v1672 = vld [vmem:[#allocation2 + $0x6] sm:$0xff]
    %v1673 = vld [vmem:[#allocation2 + $0xe] sm:$0xff]
    %v1674 = vld [vmem:[#allocation2 + $0x1e] sm:$0xff]
    %v1675 = vld [vmem:[#allocation2 + $0x26] sm:$0xff]
    %v1676 = vsel %vm1671, %v1672, 0.0
    %v1677 = vsel %vm1671, %v1673, 0.0
    %v1678 = vsel %vm1671, %v1674, 0.0
    %v1679 = vsel %vm1671, %v1675, 0.0
    %v1680 = vadd.f32 %v1667, %v1676
    %v1681 = vadd.f32 %v1668, %v1677
    %v1682 = vadd.f32 %v1669, %v1678
    %v1683 = vadd.f32 %v1670, %v1679
    %vm1684 = vcmp.eq.s32.totalorder %v1592, 7
    %v1685 = vld [vmem:[#allocation2 + $0x7] sm:$0xff]
    %v1686 = vld [vmem:[#allocation2 + $0xf] sm:$0xff]
    %v1687 = vld [vmem:[#allocation2 + $0x1f] sm:$0xff]
    %v1688 = vld [vmem:[#allocation2 + $0x27] sm:$0xff]
    %v1689 = vsel %vm1684, %v1685, 0.0
    %v1690 = vsel %vm1684, %v1686, 0.0
    %v1691 = vsel %vm1684, %v1687, 0.0
    %v1692 = vsel %vm1684, %v1688, 0.0
    %v1693 = vadd.f32 %v1680, %v1689
    %v1694 = vadd.f32 %v1681, %v1690
    %v1695 = vadd.f32 %v1682, %v1691
    %v1696 = vadd.f32 %v1683, %v1692
    %vm1697 = vcmp.eq.s32.totalorder %v1592, 8
    %v1698 = vld [vmem:[#allocation2 + $0x10] sm:$0xff]
    %v1699 = vld [vmem:[#allocation2 + $0x28] sm:$0xff]
    %v1700 = vsel %vm1697, %v1595, 0.0
    %v1701 = vsel %vm1697, %v1698, 0.0
    %v1702 = vsel %vm1697, %v1597, 0.0
    %v1703 = vsel %vm1697, %v1699, 0.0
    %v1704 = vadd.f32 %v1693, %v1700
    %v1705 = vadd.f32 %v1694, %v1701
    %v1706 = vadd.f32 %v1695, %v1702
    %v1707 = vadd.f32 %v1696, %v1703
    %v1708 = vsel %vm1586, %v1704, 0.0
    %1709 = vadd.xlane.f32.xlu0 %v1708
    %v1710 = vpop.xlane.xlu0 %1709
    %v1711 = vsel %vm1586, %v1705, 0.0
    %1712 = vadd.xlane.f32.xlu0 %v1711
    %v1713 = vpop.xlane.xlu0 %1712
    %v1714 = vsel %vm1586, %v1706, 0.0
    %1715 = vadd.xlane.f32.xlu0 %v1714
    %v1716 = vpop.xlane.xlu0 %1715
    %v1717 = vsel %vm1586, %v1707, 0.0
    %1718 = vadd.xlane.f32.xlu0 %v1717
    %v1719 = vpop.xlane.xlu0 %1718
    %s1720 = sld [smem:[#allocation7]]
    %v1721 = vstv %s1720
    %v1722 = vmul.f32 %v1710, %v1721
    %v1723 = vmul.f32 %v1713, %v1721
    %v1724 = vmul.f32 %v1716, %v1721
    %v1725 = vmul.f32 %v1719, %v1721
    %s1726 = sld [smem:[#allocation7 + $0x1]]
    %v1727 = vstv %s1726
    %v1728 = vadd.f32 %v1722, %v1727
    %v1729 = vadd.f32 %v1723, %v1727
    %v1730 = vadd.f32 %v1724, %v1727
    %v1731 = vadd.f32 %v1725, %v1727
    %v1732 = vmax.f32 %v1728, 0.0
    %v1733 = vmax.f32 %v1729, 0.0
    %v1734 = vmax.f32 %v1730, 0.0
    %v1735 = vmax.f32 %v1731, 0.0
    %v1740 = vlaneseq
    %v1741 = vshrl.u32 %v1740, 7
    %v1742 = vsub.s32 %v1592, %v1741
    %v1743 = vrot.slane %v1732, %v1742
    %v1744 = vadd.s32 %v1592, 4294967288
    %v1745 = vlaneseq
    %v1746 = vshrl.u32 %v1745, 7
    %v1747 = vsub.s32 %v1744, %v1746
    %v1748 = vrot.slane %v1733, %v1747
    %vm1749 = vcmask 130112
    %v1750 = vsel %vm1749, %v1748, %v1743
    %v1751 = vlaneseq
    %v1752 = vshrl.u32 %v1751, 7
    %v1753 = vsub.s32 %v1592, %v1752
    %v1754 = vrot.slane %v1734, %v1753
    %v1755 = vlaneseq
    %v1756 = vshrl.u32 %v1755, 7
    %v1757 = vsub.s32 %v1744, %v1756
    %v1758 = vrot.slane %v1735, %v1757
    %v1759 = vsel %vm1749, %v1758, %v1754
    %vm1760 = vcmask 1041409
    %v1761 = vsel %vm1760, %v1759, %v1750
    %vm1763 = vcmask 123904
    %1764 = vst.msk [vmem:[#allocation8] sm:$0x3] %vm1763, %v1761
    // Predicated region
    $region38: #{tpu_custom_call.1} parent=1 // pred_check
      _
    $region39: #{tpu_custom_call.1} parent=1 // pred_check_branch
      %1766 = sbr.rel (0) target = $region41
    $region40: #{tpu_custom_call.1} parent=1 // pred_region
      %s1768 = ssub.s32 32, 32
      %1769 = vsyncadd [#allocation5], %s1768
      %s1771 = sshll.u32 [#allocation8], 4
      %s1772 = int_to_ptr.vmem [resolvable:$true] %s1771
      %1774 = dma.vmem_to_hbm [thread:$0]  %s1772, 32, %s6, [#allocation5]
    $region41: #{tpu_custom_call.1} parent=1 // pred_fallthru
      _
    // Predicated region
    $region42: #{tpu_custom_call.1} parent=1 // pred_check
      _
    $region43: #{tpu_custom_call.1} parent=1 // pred_check_branch
      %1776 = sbr.rel (0) target = $region45
    $region44: #{tpu_custom_call.1} parent=1 // pred_region
      %1777 = dma.done [#allocation5], 32
    $region45: #{tpu_custom_call.1} parent=1 // pred_fallthru
      _
    %1778 = vsyncpa [#allocation4], 1
    %1779 = vsyncpa [#allocation5], 1
    %1780 = vsyncpa [#allocation6], 1

</llo_original>
